<compile_context>
chip_gen: v7x
topology: tpu7x:2x2x1
jax: 0.10.0
libtpu: 0.0.40
codegen_flags: <defaults>
</compile_context>

<pallas_src>
import functools

import jax
import jax.numpy as jnp
from jax.experimental import pallas as pl
from jax.experimental.pallas import tpu as pltpu


def tagcn_fused_kernel(x_ref, adj_ref, w1_ref, w2_ref, o_ref, *, K, compute_dtype):
    """Fused 2-layer TAGCN forward, entirely in VMEM.

    Per layer: generate hop features iteratively (h <- A @ h), lane-concat them
    into H (a cheap XLU op that co-issues alongside the MXU), then one matmul
    against the flattened weight.  adj is loaded once and reused by both layers.
    """
    adj = adj_ref[...].astype(compute_dtype)

    def tagconv(h0_f32, w_flat_ref):
        hops = [h0_f32]
        h = h0_f32
        for _ in range(K):
            h = jnp.dot(adj, h.astype(compute_dtype),
                        preferred_element_type=jnp.float32)
            hops.append(h)
        H = jnp.concatenate(hops, axis=-1)                      # (N, (K+1)*Fin)
        w_flat = w_flat_ref[...].astype(compute_dtype)          # ((K+1)*Fin, Fout)
        return jnp.dot(H.astype(compute_dtype), w_flat,
                       preferred_element_type=jnp.float32)

    h1 = tagconv(x_ref[...].astype(jnp.float32), w1_ref)
    h1 = jnp.maximum(h1, 0.0)                                   # f32 VPU epilogue
    y = tagconv(h1, w2_ref)
    o_ref[...] = y.astype(o_ref.dtype)


def tagcn_forward(x, adj, w1, w2, *, K=3, compute_dtype=jnp.float32):
    """Full TAGCN forward (eval mode) as one pallas_call.

    w1 / w2 may be given as (K+1, Fin, Fout) hop-split weights; they are
    flattened on the wrapper side to 2D ((K+1)*Fin, Fout) so the kernel sees a
    lane-contiguous weight slab and does a single matmul per layer.
    """
    N, Fin = x.shape
    assert adj.shape == (N, N)

    def flatten_w(w):
        if w.ndim == 3:
            return w.reshape(w.shape[0] * w.shape[1], w.shape[2])
        return w

    w1_flat = flatten_w(w1)
    w2_flat = flatten_w(w2)
    hid = w1_flat.shape[1]
    f_out = w2_flat.shape[1]
    assert w1_flat.shape[0] == (K + 1) * Fin
    assert w2_flat.shape[0] == (K + 1) * hid

    kernel = functools.partial(tagcn_fused_kernel, K=K, compute_dtype=compute_dtype)

    return pl.pallas_call(
        kernel,
        out_shape=jax.ShapeDtypeStruct((N, f_out), x.dtype),
        grid=(1,),
        in_specs=[
            pl.BlockSpec((N, Fin), lambda i: (0, 0)),
            pl.BlockSpec((N, N), lambda i: (0, 0)),
            pl.BlockSpec(w1_flat.shape, lambda i: (0, 0)),
            pl.BlockSpec(w2_flat.shape, lambda i: (0, 0)),
        ],
        out_specs=pl.BlockSpec((N, f_out), lambda i: (0, 0)),
        compiler_params=pltpu.CompilerParams(
            dimension_semantics=("arbitrary",)),
    )(x, adj, w1_flat, w2_flat)


def _glorot_uniform(key, shape):
    fan_in, fan_out = shape[0] * shape[1], shape[2]
    limit = jnp.sqrt(6.0 / (fan_in + fan_out))
    return jax.random.uniform(key, shape, jnp.float32, -limit, limit)


if __name__ == "__main__":
    # Small, module-consistent shapes:
    #   N=128 nodes, in_features=32, hids=[16], out_features=8, K=3, bias=False.
    N, F_IN, HID, F_OUT, K = 128, 32, 16, 8, 3

    key = jax.random.PRNGKey(0)
    kx, ka, kw1, kw2 = jax.random.split(key, 4)

    # Node features.
    x = jax.random.normal(kx, (N, F_IN), jnp.float32)

    # Deterministic dense "adjacency": sparse-ish random graph with self loops,
    # row-normalized (as graphgallery preprocesses adj before the model).
    a = (jax.random.uniform(ka, (N, N)) < 0.05).astype(jnp.float32)
    a = jnp.maximum(a, a.T) + jnp.eye(N, dtype=jnp.float32)
    adj = a / jnp.sum(a, axis=1, keepdims=True)

    # Layer weights, (K+1, F_in, F_out), matching Linear((K+1)*F_in, F_out, bias=False)
    # with its weight transposed and split per hop.
    w1 = _glorot_uniform(kw1, (K + 1, F_IN, HID))
    w2 = _glorot_uniform(kw2, (K + 1, HID, F_OUT))

    out = tagcn_forward(x, adj, w1, w2, K=K)
    out = jax.block_until_ready(out)

    # Pure-JAX reference (concat-of-hops @ W formulation).
    def ref_tagconv(x, adj, w, relu):
        hops = [x]
        h = x
        for _ in range(K):
            h = adj @ h
            hops.append(h)
        y = jnp.concatenate(hops, axis=-1) @ w.reshape((K + 1) * w.shape[1], w.shape[2])
        return jnp.maximum(y, 0.0) if relu else y

    ref = ref_tagconv(ref_tagconv(x, adj, w1, True), adj, w2, False)
    assert out.shape == (N, F_OUT)
    assert jnp.allclose(out, ref, atol=1e-4, rtol=1e-4)

    print("KERNEL_OK")
</pallas_src>

<mosaic_0001>
module attributes {stable_mosaic.version = 11 : i64} {
  func.func @tagcn_fused_kernel(%arg0: i32, %arg1: memref<128x32xf32, #tpu.memory_space<vmem>>, %arg2: memref<128x128xf32, #tpu.memory_space<vmem>>, %arg3: memref<128x16xf32, #tpu.memory_space<vmem>>, %arg4: memref<64x8xf32, #tpu.memory_space<vmem>>, %arg5: memref<128x8xf32, #tpu.memory_space<vmem>>) attributes {dimension_semantics = [#tpu.dimension_semantics<arbitrary>], iteration_bounds = array<i64: 1>, scalar_prefetch = 0 : i64, scratch_operands = 0 : i64, tpu.core_type = #tpu.core_type<tc>, window_params = [{pipeline_mode = #tpu.pipeline_mode<synchronous>, transform_indices = @transform_0, window_bounds = array<i64: 128, 32>}, {pipeline_mode = #tpu.pipeline_mode<synchronous>, transform_indices = @transform_1, window_bounds = array<i64: 128, 128>}, {pipeline_mode = #tpu.pipeline_mode<synchronous>, transform_indices = @transform_2, window_bounds = array<i64: 128, 16>}, {pipeline_mode = #tpu.pipeline_mode<synchronous>, transform_indices = @transform_3, window_bounds = array<i64: 64, 8>}, {pipeline_mode = #tpu.pipeline_mode<synchronous>, transform_indices = @transform_4, window_bounds = array<i64: 128, 8>}]} {
    %c0 = arith.constant 0 : index
    %c0_0 = arith.constant 0 : index
    %0 = vector.load %arg2[%c0, %c0_0] : memref<128x128xf32, #tpu.memory_space<vmem>>, vector<128x128xf32>
    %c0_1 = arith.constant 0 : index
    %c0_2 = arith.constant 0 : index
    %1 = vector.load %arg1[%c0_1, %c0_2] : memref<128x32xf32, #tpu.memory_space<vmem>>, vector<128x32xf32>
    %cst = arith.constant dense<0.000000e+00> : vector<128x32xf32>
    %2 = tpu.matmul %0, %1, %cst {dimension_numbers = #tpu.dot_dimension_numbers<[1], [0], [0], [1], [0, 0, 1, 1], [], []>} : vector<128x128xf32>, vector<128x32xf32>, vector<128x32xf32> -> vector<128x32xf32>
    %cst_3 = arith.constant dense<0.000000e+00> : vector<128x32xf32>
    %3 = tpu.matmul %0, %2, %cst_3 {dimension_numbers = #tpu.dot_dimension_numbers<[1], [0], [0], [1], [0, 0, 1, 1], [], []>} : vector<128x128xf32>, vector<128x32xf32>, vector<128x32xf32> -> vector<128x32xf32>
    %cst_4 = arith.constant dense<0.000000e+00> : vector<128x32xf32>
    %4 = tpu.matmul %0, %3, %cst_4 {dimension_numbers = #tpu.dot_dimension_numbers<[1], [0], [0], [1], [0, 0, 1, 1], [], []>} : vector<128x128xf32>, vector<128x32xf32>, vector<128x32xf32> -> vector<128x32xf32>
    %5 = tpu.concatenate %1, %2, %3, %4 in 1 : vector<128x32xf32>, vector<128x32xf32>, vector<128x32xf32>, vector<128x32xf32> -> vector<128x128xf32>
    %c0_5 = arith.constant 0 : index
    %c0_6 = arith.constant 0 : index
    %6 = vector.load %arg3[%c0_5, %c0_6] : memref<128x16xf32, #tpu.memory_space<vmem>>, vector<128x16xf32>
    %cst_7 = arith.constant dense<0.000000e+00> : vector<128x16xf32>
    %7 = tpu.matmul %5, %6, %cst_7 {dimension_numbers = #tpu.dot_dimension_numbers<[1], [0], [0], [1], [0, 0, 1, 1], [], []>} : vector<128x128xf32>, vector<128x16xf32>, vector<128x16xf32> -> vector<128x16xf32>
    %cst_8 = arith.constant 0.000000e+00 : f32
    %8 = vector.broadcast %cst_8 : f32 to vector<128x16xf32>
    %9 = arith.maximumf %7, %8 : vector<128x16xf32>
    %cst_9 = arith.constant dense<0.000000e+00> : vector<128x16xf32>
    %10 = tpu.matmul %0, %9, %cst_9 {dimension_numbers = #tpu.dot_dimension_numbers<[1], [0], [0], [1], [0, 0, 1, 1], [], []>} : vector<128x128xf32>, vector<128x16xf32>, vector<128x16xf32> -> vector<128x16xf32>
    %cst_10 = arith.constant dense<0.000000e+00> : vector<128x16xf32>
    %11 = tpu.matmul %0, %10, %cst_10 {dimension_numbers = #tpu.dot_dimension_numbers<[1], [0], [0], [1], [0, 0, 1, 1], [], []>} : vector<128x128xf32>, vector<128x16xf32>, vector<128x16xf32> -> vector<128x16xf32>
    %cst_11 = arith.constant dense<0.000000e+00> : vector<128x16xf32>
    %12 = tpu.matmul %0, %11, %cst_11 {dimension_numbers = #tpu.dot_dimension_numbers<[1], [0], [0], [1], [0, 0, 1, 1], [], []>} : vector<128x128xf32>, vector<128x16xf32>, vector<128x16xf32> -> vector<128x16xf32>
    %13 = tpu.concatenate %9, %10, %11, %12 in 1 : vector<128x16xf32>, vector<128x16xf32>, vector<128x16xf32>, vector<128x16xf32> -> vector<128x64xf32>
    %c0_12 = arith.constant 0 : index
    %c0_13 = arith.constant 0 : index
    %14 = vector.load %arg4[%c0_12, %c0_13] : memref<64x8xf32, #tpu.memory_space<vmem>>, vector<64x8xf32>
    %cst_14 = arith.constant dense<0.000000e+00> : vector<128x8xf32>
    %15 = tpu.matmul %13, %14, %cst_14 {dimension_numbers = #tpu.dot_dimension_numbers<[1], [0], [0], [1], [0, 0, 1, 1], [], []>} : vector<128x64xf32>, vector<64x8xf32>, vector<128x8xf32> -> vector<128x8xf32>
    %c0_15 = arith.constant 0 : index
    %c0_16 = arith.constant 0 : index
    %16 = vector.load %arg5[%c0_15, %c0_16] : memref<128x8xf32, #tpu.memory_space<vmem>>, vector<128x8xf32>
    tpu.vector_store %arg5[%c0_15, %c0_16], %15 {strides = array<i32>} : memref<128x8xf32, #tpu.memory_space<vmem>>, vector<128x8xf32>,
    return
  }
  func.func @transform_0(%arg0: i32) -> (i32, i32) {
    %c0_i32 = arith.constant 0 : i32
    %c0_i32_0 = arith.constant 0 : i32
    %c0_i32_1 = arith.constant 0 : i32
    return %c0_i32, %c0_i32_0 : i32, i32
  }
  func.func @transform_1(%arg0: i32) -> (i32, i32) {
    %c0_i32 = arith.constant 0 : i32
    %c0_i32_0 = arith.constant 0 : i32
    %c0_i32_1 = arith.constant 0 : i32
    return %c0_i32, %c0_i32_0 : i32, i32
  }
  func.func @transform_2(%arg0: i32) -> (i32, i32) {
    %c0_i32 = arith.constant 0 : i32
    %c0_i32_0 = arith.constant 0 : i32
    %c0_i32_1 = arith.constant 0 : i32
    return %c0_i32, %c0_i32_0 : i32, i32
  }
  func.func @transform_3(%arg0: i32) -> (i32, i32) {
    %c0_i32 = arith.constant 0 : i32
    %c0_i32_0 = arith.constant 0 : i32
    %c0_i32_1 = arith.constant 0 : i32
    return %c0_i32, %c0_i32_0 : i32, i32
  }
  func.func @transform_4(%arg0: i32) -> (i32, i32) {
    %c0_i32 = arith.constant 0 : i32
    %c0_i32_0 = arith.constant 0 : i32
    %c0_i32_1 = arith.constant 0 : i32
    return %c0_i32, %c0_i32_0 : i32, i32
  }
}

</mosaic_0001>

<llo_original>
// kernel: tpu_custom_call.1
$region0: #{tpu_custom_call.1}
  #allocation0 [shape = 'u32[]', space=smem, size = 0x4, offset = 0x4, fixed_abs, tag = 'smem constant byte address 0x4 - core index']
  #allocation1 [shape = 'u32[144,128]{1,0:T(1,128)}', space=vmem, size = 0x12000, scoped, tag = 'internal scratch']
  %s0 = inlined_call_operand.vmem [shape: f32[128,32], index: 0, kind: input, shape index: {}]
  %s1 = inlined_call_operand.vmem [shape: f32[128,128], index: 1, kind: input, shape index: {}]
  %s2 = inlined_call_operand.vmem [shape: f32[128,16], index: 2, kind: input, shape index: {}]
  %s3 = inlined_call_operand.vmem [shape: f32[64,8], index: 3, kind: input, shape index: {}]
  %s4 = inlined_call_operand.vmem [shape: f32[128,8], index: 4, kind: output, shape index: {}]
  %s5 = sld [smem:[#allocation0]]
  $region26: #{tpu_custom_call.1} parent=0
    _
  %s7 = ssub.s32 1, %s5
  %s8 = scalar_select 0, %s7, %s5
  // Predicated region
  $region2: #{tpu_custom_call.1} parent=0 // pred_check
    _
  $region3: #{tpu_custom_call.1} parent=0 // pred_check_branch
    %10 = sbr.rel (0) target = $region5
  $region4: #{tpu_custom_call.1} parent=0 // pred_region
    _
  $region5: #{tpu_custom_call.1} parent=0 // pred_fallthru
    _
  // Predicated region
  $region6: #{tpu_custom_call.1} parent=0 // pred_check
    _
  $region7: #{tpu_custom_call.1} parent=0 // pred_check_branch
    %12 = sbr.rel (0) target = $region9
  $region8: #{tpu_custom_call.1} parent=0 // pred_region
    _
  $region9: #{tpu_custom_call.1} parent=0 // pred_fallthru
    _
  // Predicated region
  $region10: #{tpu_custom_call.1} parent=0 // pred_check
    _
  $region11: #{tpu_custom_call.1} parent=0 // pred_check_branch
    %14 = sbr.rel (0) target = $region13
  $region12: #{tpu_custom_call.1} parent=0 // pred_region
    _
  $region13: #{tpu_custom_call.1} parent=0 // pred_fallthru
    _
  // Predicated region
  $region14: #{tpu_custom_call.1} parent=0 // pred_check
    _
  $region15: #{tpu_custom_call.1} parent=0 // pred_check_branch
    %16 = sbr.rel (0) target = $region17
  $region16: #{tpu_custom_call.1} parent=0 // pred_region
    _
  $region17: #{tpu_custom_call.1} parent=0 // pred_fallthru
    _
  %v17 = vld [vmem:[%s1] sm:$0xff]
  %v18 = vld [vmem:[%s1 + $0x8] sm:$0xff]
  %v19 = vld [vmem:[%s1 + $0x10] sm:$0xff]
  %v20 = vld [vmem:[%s1 + $0x18] sm:$0xff]
  %v21 = vld [vmem:[%s1 + $0x20] sm:$0xff]
  %v22 = vld [vmem:[%s1 + $0x28] sm:$0xff]
  %v23 = vld [vmem:[%s1 + $0x30] sm:$0xff]
  %v24 = vld [vmem:[%s1 + $0x38] sm:$0xff]
  %v25 = vld [vmem:[%s1 + $0x40] sm:$0xff]
  %v26 = vld [vmem:[%s1 + $0x48] sm:$0xff]
  %v27 = vld [vmem:[%s1 + $0x50] sm:$0xff]
  %v28 = vld [vmem:[%s1 + $0x58] sm:$0xff]
  %v29 = vld [vmem:[%s1 + $0x60] sm:$0xff]
  %v30 = vld [vmem:[%s1 + $0x68] sm:$0xff]
  %v31 = vld [vmem:[%s1 + $0x70] sm:$0xff]
  %v32 = vld [vmem:[%s1 + $0x78] sm:$0xff]
  %v33 = vld [vmem:[%s0] sm:$0xff]
  %v34 = vld [vmem:[%s0 + $0x8] sm:$0xff]
  %v35 = vld [vmem:[%s0 + $0x10] sm:$0xff]
  %v36 = vld [vmem:[%s0 + $0x18] sm:$0xff]
  %v37 = vld [vmem:[%s0 + $0x20] sm:$0xff]
  %v38 = vld [vmem:[%s0 + $0x28] sm:$0xff]
  %v39 = vld [vmem:[%s0 + $0x30] sm:$0xff]
  %v40 = vld [vmem:[%s0 + $0x38] sm:$0xff]
  %v41 = vld [vmem:[%s0 + $0x40] sm:$0xff]
  %v42 = vld [vmem:[%s0 + $0x48] sm:$0xff]
  %v43 = vld [vmem:[%s0 + $0x50] sm:$0xff]
  %v44 = vld [vmem:[%s0 + $0x58] sm:$0xff]
  %v45 = vld [vmem:[%s0 + $0x60] sm:$0xff]
  %v46 = vld [vmem:[%s0 + $0x68] sm:$0xff]
  %v47 = vld [vmem:[%s0 + $0x70] sm:$0xff]
  %v48 = vld [vmem:[%s0 + $0x78] sm:$0xff]
  %49 = vmatprep.subr.mxu0 0.0
  %50 = vmatpush1.msra.mxu0 %v33
  %51 = vmatprep.subr.mxu0 0.0
  %52 = vmatpush1.msra.mxu0 %v34
  %53 = vmatprep.subr.mxu0 0.0
  %54 = vmatpush1.msra.mxu0 %v35
  %55 = vmatprep.subr.mxu0 0.0
  %56 = vmatpush1.msra.mxu0 %v36
  %57 = vmatprep.subr.mxu0 0.0
  %58 = vmatpush1.msra.mxu0 %v37
  %59 = vmatprep.subr.mxu0 0.0
  %60 = vmatpush1.msra.mxu0 %v38
  %61 = vmatprep.subr.mxu0 0.0
  %62 = vmatpush1.msra.mxu0 %v39
  %63 = vmatprep.subr.mxu0 0.0
  %64 = vmatpush1.msra.mxu0 %v40
  %65 = vmatprep.subr.mxu0 0.0
  %66 = vmatpush1.msra.mxu0 %v41
  %67 = vmatprep.subr.mxu0 0.0
  %68 = vmatpush1.msra.mxu0 %v42
  %69 = vmatprep.subr.mxu0 0.0
  %70 = vmatpush1.msra.mxu0 %v43
  %71 = vmatprep.subr.mxu0 0.0
  %72 = vmatpush1.msra.mxu0 %v44
  %73 = vmatprep.subr.mxu0 0.0
  %74 = vmatpush1.msra.mxu0 %v45
  %75 = vmatprep.subr.mxu0 0.0
  %76 = vmatpush1.msra.mxu0 %v46
  %77 = vmatprep.subr.mxu0 0.0
  %78 = vmatpush1.msra.mxu0 %v47
  %79 = vmatprep.subr.mxu0 0.0
  %80 = vmatpush1.msra.mxu0 %v48
  %81 = vmatprep.subr.mxu0 0.0
  %82 = vmatpush1.msra.mxu0 0.0
  %83 = vmatprep.subr.mxu0 0.0
  %84 = vmatpush1.msra.mxu0 0.0
  %85 = vmatprep.subr.mxu0 0.0
  %86 = vmatpush1.msra.mxu0 0.0
  %87 = vmatprep.subr.mxu0 0.0
  %88 = vmatpush1.msra.mxu0 0.0
  %89 = vmatprep.subr.mxu0 0.0
  %90 = vmatpush1.msra.mxu0 0.0
  %91 = vmatprep.subr.mxu0 0.0
  %92 = vmatpush1.msra.mxu0 0.0
  %93 = vmatprep.subr.mxu0 0.0
  %94 = vmatpush1.msra.mxu0 0.0
  %95 = vmatprep.subr.mxu0 0.0
  %96 = vmatpush1.msra.mxu0 0.0
  %97 = vmatprep.subr.mxu0 0.0
  %98 = vmatpush1.msra.mxu0 0.0
  %99 = vmatprep.subr.mxu0 0.0
  %100 = vmatpush1.msra.mxu0 0.0
  %101 = vmatprep.subr.mxu0 0.0
  %102 = vmatpush1.msra.mxu0 0.0
  %103 = vmatprep.subr.mxu0 0.0
  %104 = vmatpush1.msra.mxu0 0.0
  %105 = vmatprep.subr.mxu0 0.0
  %106 = vmatpush1.msra.mxu0 0.0
  %107 = vmatprep.subr.mxu0 0.0
  %108 = vmatpush1.msra.mxu0 0.0
  %109 = vmatprep.subr.mxu0 0.0
  %110 = vmatpush1.msra.mxu0 0.0
  %111 = vmatprep.subr.mxu0 0.0
  %112 = vmatpush1.msra.mxu0 0.0
  %113 = vmatprep.mubr.f32.mxu0 0.0
  %114 = vmatmul.mubr.f32.gmra.mrb[0].mxu0 %v17
  %v115 = vpop.f32.mrb[0].mxu0
  %v116 = vadd.f32 0.0, %v115
  %v117 = vpop.f32.mrb[0].mxu0
  %118 = vmatprep.mubr.f32.mxu0 0.0
  %119 = vmatmul.mubr.f32.gmra.mrb[0].mxu0 %v18
  %v120 = vpop.f32.mrb[0].mxu0
  %v121 = vadd.f32 0.0, %v120
  %v122 = vpop.f32.mrb[0].mxu0
  %123 = vmatprep.mubr.f32.mxu0 0.0
  %124 = vmatmul.mubr.f32.gmra.mrb[0].mxu0 %v19
  %v125 = vpop.f32.mrb[0].mxu0
  %v126 = vadd.f32 0.0, %v125
  %v127 = vpop.f32.mrb[0].mxu0
  %128 = vmatprep.mubr.f32.mxu0 0.0
  %129 = vmatmul.mubr.f32.gmra.mrb[0].mxu0 %v20
  %v130 = vpop.f32.mrb[0].mxu0
  %v131 = vadd.f32 0.0, %v130
  %v132 = vpop.f32.mrb[0].mxu0
  %133 = vmatprep.mubr.f32.mxu0 0.0
  %134 = vmatmul.mubr.f32.gmra.mrb[0].mxu0 %v21
  %v135 = vpop.f32.mrb[0].mxu0
  %v136 = vadd.f32 0.0, %v135
  %v137 = vpop.f32.mrb[0].mxu0
  %138 = vmatprep.mubr.f32.mxu0 0.0
  %139 = vmatmul.mubr.f32.gmra.mrb[0].mxu0 %v22
  %v140 = vpop.f32.mrb[0].mxu0
  %v141 = vadd.f32 0.0, %v140
  %v142 = vpop.f32.mrb[0].mxu0
  %143 = vmatprep.mubr.f32.mxu0 0.0
  %144 = vmatmul.mubr.f32.gmra.mrb[0].mxu0 %v23
  %v145 = vpop.f32.mrb[0].mxu0
  %v146 = vadd.f32 0.0, %v145
  %v147 = vpop.f32.mrb[0].mxu0
  %148 = vmatprep.mubr.f32.mxu0 0.0
  %149 = vmatmul.mubr.f32.gmra.mrb[0].mxu0 %v24
  %v150 = vpop.f32.mrb[0].mxu0
  %v151 = vadd.f32 0.0, %v150
  %v152 = vpop.f32.mrb[0].mxu0
  %153 = vmatprep.mubr.f32.mxu0 0.0
  %154 = vmatmul.mubr.f32.gmra.mrb[0].mxu0 %v25
  %v155 = vpop.f32.mrb[0].mxu0
  %v156 = vadd.f32 0.0, %v155
  %v157 = vpop.f32.mrb[0].mxu0
  %158 = vmatprep.mubr.f32.mxu0 0.0
  %159 = vmatmul.mubr.f32.gmra.mrb[0].mxu0 %v26
  %v160 = vpop.f32.mrb[0].mxu0
  %v161 = vadd.f32 0.0, %v160
  %v162 = vpop.f32.mrb[0].mxu0
  %163 = vmatprep.mubr.f32.mxu0 0.0
  %164 = vmatmul.mubr.f32.gmra.mrb[0].mxu0 %v27
  %v165 = vpop.f32.mrb[0].mxu0
  %v166 = vadd.f32 0.0, %v165
  %v167 = vpop.f32.mrb[0].mxu0
  %168 = vmatprep.mubr.f32.mxu0 0.0
  %169 = vmatmul.mubr.f32.gmra.mrb[0].mxu0 %v28
  %v170 = vpop.f32.mrb[0].mxu0
  %v171 = vadd.f32 0.0, %v170
  %v172 = vpop.f32.mrb[0].mxu0
  %173 = vmatprep.mubr.f32.mxu0 0.0
  %174 = vmatmul.mubr.f32.gmra.mrb[0].mxu0 %v29
  %v175 = vpop.f32.mrb[0].mxu0
  %v176 = vadd.f32 0.0, %v175
  %v177 = vpop.f32.mrb[0].mxu0
  %178 = vmatprep.mubr.f32.mxu0 0.0
  %179 = vmatmul.mubr.f32.gmra.mrb[0].mxu0 %v30
  %v180 = vpop.f32.mrb[0].mxu0
  %v181 = vadd.f32 0.0, %v180
  %v182 = vpop.f32.mrb[0].mxu0
  %183 = vmatprep.mubr.f32.mxu0 0.0
  %184 = vmatmul.mubr.f32.gmra.mrb[0].mxu0 %v31
  %v185 = vpop.f32.mrb[0].mxu0
  %v186 = vadd.f32 0.0, %v185
  %v187 = vpop.f32.mrb[0].mxu0
  %188 = vmatprep.mubr.f32.mxu0 0.0
  %189 = vmatmul.mubr.f32.gmra.mrb[0].mxu0 %v32
  %v190 = vpop.f32.mrb[0].mxu0
  %v191 = vadd.f32 0.0, %v190
  %v192 = vpop.f32.mrb[0].mxu0
  %193 = vdwg.mxu0
  %194 = vmatprep.subr.mxu0 0.0
  %195 = vmatpush1.msra.mxu0 %v116
  %196 = vmatprep.subr.mxu0 0.0
  %197 = vmatpush1.msra.mxu0 %v121
  %198 = vmatprep.subr.mxu0 0.0
  %199 = vmatpush1.msra.mxu0 %v126
  %200 = vmatprep.subr.mxu0 0.0
  %201 = vmatpush1.msra.mxu0 %v131
  %202 = vmatprep.subr.mxu0 0.0
  %203 = vmatpush1.msra.mxu0 %v136
  %204 = vmatprep.subr.mxu0 0.0
  %205 = vmatpush1.msra.mxu0 %v141
  %206 = vmatprep.subr.mxu0 0.0
  %207 = vmatpush1.msra.mxu0 %v146
  %208 = vmatprep.subr.mxu0 0.0
  %209 = vmatpush1.msra.mxu0 %v151
  %210 = vmatprep.subr.mxu0 0.0
  %211 = vmatpush1.msra.mxu0 %v156
  %212 = vmatprep.subr.mxu0 0.0
  %213 = vmatpush1.msra.mxu0 %v161
  %214 = vmatprep.subr.mxu0 0.0
  %215 = vmatpush1.msra.mxu0 %v166
  %216 = vmatprep.subr.mxu0 0.0
  %217 = vmatpush1.msra.mxu0 %v171
  %218 = vmatprep.subr.mxu0 0.0
  %219 = vmatpush1.msra.mxu0 %v176
  %220 = vmatprep.subr.mxu0 0.0
  %221 = vmatpush1.msra.mxu0 %v181
  %222 = vmatprep.subr.mxu0 0.0
  %223 = vmatpush1.msra.mxu0 %v186
  %224 = vmatprep.subr.mxu0 0.0
  %225 = vmatpush1.msra.mxu0 %v191
  %226 = vmatprep.subr.mxu0 0.0
  %227 = vmatpush1.msra.mxu0 0.0
  %228 = vmatprep.subr.mxu0 0.0
  %229 = vmatpush1.msra.mxu0 0.0
  %230 = vmatprep.subr.mxu0 0.0
  %231 = vmatpush1.msra.mxu0 0.0
  %232 = vmatprep.subr.mxu0 0.0
  %233 = vmatpush1.msra.mxu0 0.0
  %234 = vmatprep.subr.mxu0 0.0
  %235 = vmatpush1.msra.mxu0 0.0
  %236 = vmatprep.subr.mxu0 0.0
  %237 = vmatpush1.msra.mxu0 0.0
  %238 = vmatprep.subr.mxu0 0.0
  %239 = vmatpush1.msra.mxu0 0.0
  %240 = vmatprep.subr.mxu0 0.0
  %241 = vmatpush1.msra.mxu0 0.0
  %242 = vmatprep.subr.mxu0 0.0
  %243 = vmatpush1.msra.mxu0 0.0
  %244 = vmatprep.subr.mxu0 0.0
  %245 = vmatpush1.msra.mxu0 0.0
  %246 = vmatprep.subr.mxu0 0.0
  %247 = vmatpush1.msra.mxu0 0.0
  %248 = vmatprep.subr.mxu0 0.0
  %249 = vmatpush1.msra.mxu0 0.0
  %250 = vmatprep.subr.mxu0 0.0
  %251 = vmatpush1.msra.mxu0 0.0
  %252 = vmatprep.subr.mxu0 0.0
  %253 = vmatpush1.msra.mxu0 0.0
  %254 = vmatprep.subr.mxu0 0.0
  %255 = vmatpush1.msra.mxu0 0.0
  %256 = vmatprep.subr.mxu0 0.0
  %257 = vmatpush1.msra.mxu0 0.0
  %258 = vmatprep.mubr.f32.mxu0 0.0
  %259 = vmatmul.mubr.f32.gmra.mrb[0].mxu0 %v17
  %v260 = vpop.f32.mrb[0].mxu0
  %v261 = vadd.f32 0.0, %v260
  %v262 = vpop.f32.mrb[0].mxu0
  %263 = vmatprep.mubr.f32.mxu0 0.0
  %264 = vmatmul.mubr.f32.gmra.mrb[0].mxu0 %v18
  %v265 = vpop.f32.mrb[0].mxu0
  %v266 = vadd.f32 0.0, %v265
  %v267 = vpop.f32.mrb[0].mxu0
  %268 = vmatprep.mubr.f32.mxu0 0.0
  %269 = vmatmul.mubr.f32.gmra.mrb[0].mxu0 %v19
  %v270 = vpop.f32.mrb[0].mxu0
  %v271 = vadd.f32 0.0, %v270
  %v272 = vpop.f32.mrb[0].mxu0
  %273 = vmatprep.mubr.f32.mxu0 0.0
  %274 = vmatmul.mubr.f32.gmra.mrb[0].mxu0 %v20
  %v275 = vpop.f32.mrb[0].mxu0
  %v276 = vadd.f32 0.0, %v275
  %v277 = vpop.f32.mrb[0].mxu0
  %278 = vmatprep.mubr.f32.mxu0 0.0
  %279 = vmatmul.mubr.f32.gmra.mrb[0].mxu0 %v21
  %v280 = vpop.f32.mrb[0].mxu0
  %v281 = vadd.f32 0.0, %v280
  %v282 = vpop.f32.mrb[0].mxu0
  %283 = vmatprep.mubr.f32.mxu0 0.0
  %284 = vmatmul.mubr.f32.gmra.mrb[0].mxu0 %v22
  %v285 = vpop.f32.mrb[0].mxu0
  %v286 = vadd.f32 0.0, %v285
  %v287 = vpop.f32.mrb[0].mxu0
  %288 = vmatprep.mubr.f32.mxu0 0.0
  %289 = vmatmul.mubr.f32.gmra.mrb[0].mxu0 %v23
  %v290 = vpop.f32.mrb[0].mxu0
  %v291 = vadd.f32 0.0, %v290
  %v292 = vpop.f32.mrb[0].mxu0
  %293 = vmatprep.mubr.f32.mxu0 0.0
  %294 = vmatmul.mubr.f32.gmra.mrb[0].mxu0 %v24
  %v295 = vpop.f32.mrb[0].mxu0
  %v296 = vadd.f32 0.0, %v295
  %v297 = vpop.f32.mrb[0].mxu0
  %298 = vmatprep.mubr.f32.mxu0 0.0
  %299 = vmatmul.mubr.f32.gmra.mrb[0].mxu0 %v25
  %v300 = vpop.f32.mrb[0].mxu0
  %v301 = vadd.f32 0.0, %v300
  %v302 = vpop.f32.mrb[0].mxu0
  %303 = vmatprep.mubr.f32.mxu0 0.0
  %304 = vmatmul.mubr.f32.gmra.mrb[0].mxu0 %v26
  %v305 = vpop.f32.mrb[0].mxu0
  %v306 = vadd.f32 0.0, %v305
  %v307 = vpop.f32.mrb[0].mxu0
  %308 = vmatprep.mubr.f32.mxu0 0.0
  %309 = vmatmul.mubr.f32.gmra.mrb[0].mxu0 %v27
  %v310 = vpop.f32.mrb[0].mxu0
  %v311 = vadd.f32 0.0, %v310
  %v312 = vpop.f32.mrb[0].mxu0
  %313 = vmatprep.mubr.f32.mxu0 0.0
  %314 = vmatmul.mubr.f32.gmra.mrb[0].mxu0 %v28
  %v315 = vpop.f32.mrb[0].mxu0
  %v316 = vadd.f32 0.0, %v315
  %v317 = vpop.f32.mrb[0].mxu0
  %318 = vmatprep.mubr.f32.mxu0 0.0
  %319 = vmatmul.mubr.f32.gmra.mrb[0].mxu0 %v29
  %v320 = vpop.f32.mrb[0].mxu0
  %v321 = vadd.f32 0.0, %v320
  %v322 = vpop.f32.mrb[0].mxu0
  %323 = vmatprep.mubr.f32.mxu0 0.0
  %324 = vmatmul.mubr.f32.gmra.mrb[0].mxu0 %v30
  %v325 = vpop.f32.mrb[0].mxu0
  %v326 = vadd.f32 0.0, %v325
  %v327 = vpop.f32.mrb[0].mxu0
  %328 = vmatprep.mubr.f32.mxu0 0.0
  %329 = vmatmul.mubr.f32.gmra.mrb[0].mxu0 %v31
  %v330 = vpop.f32.mrb[0].mxu0
  %v331 = vadd.f32 0.0, %v330
  %v332 = vpop.f32.mrb[0].mxu0
  %333 = vmatprep.mubr.f32.mxu0 0.0
  %334 = vmatmul.mubr.f32.gmra.mrb[0].mxu0 %v32
  %v335 = vpop.f32.mrb[0].mxu0
  %v336 = vadd.f32 0.0, %v335
  %v337 = vpop.f32.mrb[0].mxu0
  %338 = vdwg.mxu0
  %339 = vmatprep.subr.mxu0 0.0
  %340 = vmatpush1.msra.mxu0 %v261
  %341 = vmatprep.subr.mxu0 0.0
  %342 = vmatpush1.msra.mxu0 %v266
  %343 = vmatprep.subr.mxu0 0.0
  %344 = vmatpush1.msra.mxu0 %v271
  %345 = vmatprep.subr.mxu0 0.0
  %346 = vmatpush1.msra.mxu0 %v276
  %347 = vmatprep.subr.mxu0 0.0
  %348 = vmatpush1.msra.mxu0 %v281
  %349 = vmatprep.subr.mxu0 0.0
  %350 = vmatpush1.msra.mxu0 %v286
  %351 = vmatprep.subr.mxu0 0.0
  %352 = vmatpush1.msra.mxu0 %v291
  %353 = vmatprep.subr.mxu0 0.0
  %354 = vmatpush1.msra.mxu0 %v296
  %355 = vmatprep.subr.mxu0 0.0
  %356 = vmatpush1.msra.mxu0 %v301
  %357 = vmatprep.subr.mxu0 0.0
  %358 = vmatpush1.msra.mxu0 %v306
  %359 = vmatprep.subr.mxu0 0.0
  %360 = vmatpush1.msra.mxu0 %v311
  %361 = vmatprep.subr.mxu0 0.0
  %362 = vmatpush1.msra.mxu0 %v316
  %363 = vmatprep.subr.mxu0 0.0
  %364 = vmatpush1.msra.mxu0 %v321
  %365 = vmatprep.subr.mxu0 0.0
  %366 = vmatpush1.msra.mxu0 %v326
  %367 = vmatprep.subr.mxu0 0.0
  %368 = vmatpush1.msra.mxu0 %v331
  %369 = vmatprep.subr.mxu0 0.0
  %370 = vmatpush1.msra.mxu0 %v336
  %371 = vmatprep.subr.mxu0 0.0
  %372 = vmatpush1.msra.mxu0 0.0
  %373 = vmatprep.subr.mxu0 0.0
  %374 = vmatpush1.msra.mxu0 0.0
  %375 = vmatprep.subr.mxu0 0.0
  %376 = vmatpush1.msra.mxu0 0.0
  %377 = vmatprep.subr.mxu0 0.0
  %378 = vmatpush1.msra.mxu0 0.0
  %379 = vmatprep.subr.mxu0 0.0
  %380 = vmatpush1.msra.mxu0 0.0
  %381 = vmatprep.subr.mxu0 0.0
  %382 = vmatpush1.msra.mxu0 0.0
  %383 = vmatprep.subr.mxu0 0.0
  %384 = vmatpush1.msra.mxu0 0.0
  %385 = vmatprep.subr.mxu0 0.0
  %386 = vmatpush1.msra.mxu0 0.0
  %387 = vmatprep.subr.mxu0 0.0
  %388 = vmatpush1.msra.mxu0 0.0
  %389 = vmatprep.subr.mxu0 0.0
  %390 = vmatpush1.msra.mxu0 0.0
  %391 = vmatprep.subr.mxu0 0.0
  %392 = vmatpush1.msra.mxu0 0.0
  %393 = vmatprep.subr.mxu0 0.0
  %394 = vmatpush1.msra.mxu0 0.0
  %395 = vmatprep.subr.mxu0 0.0
  %396 = vmatpush1.msra.mxu0 0.0
  %397 = vmatprep.subr.mxu0 0.0
  %398 = vmatpush1.msra.mxu0 0.0
  %399 = vmatprep.subr.mxu0 0.0
  %400 = vmatpush1.msra.mxu0 0.0
  %401 = vmatprep.subr.mxu0 0.0
  %402 = vmatpush1.msra.mxu0 0.0
  %403 = vmatprep.mubr.f32.mxu0 0.0
  %404 = vmatmul.mubr.f32.gmra.mrb[0].mxu0 %v17
  %v405 = vpop.f32.mrb[0].mxu0
  %v406 = vadd.f32 0.0, %v405
  %v407 = vpop.f32.mrb[0].mxu0
  %408 = vmatprep.mubr.f32.mxu0 0.0
  %409 = vmatmul.mubr.f32.gmra.mrb[0].mxu0 %v18
  %v410 = vpop.f32.mrb[0].mxu0
  %v411 = vadd.f32 0.0, %v410
  %v412 = vpop.f32.mrb[0].mxu0
  %413 = vmatprep.mubr.f32.mxu0 0.0
  %414 = vmatmul.mubr.f32.gmra.mrb[0].mxu0 %v19
  %v415 = vpop.f32.mrb[0].mxu0
  %v416 = vadd.f32 0.0, %v415
  %v417 = vpop.f32.mrb[0].mxu0
  %418 = vmatprep.mubr.f32.mxu0 0.0
  %419 = vmatmul.mubr.f32.gmra.mrb[0].mxu0 %v20
  %v420 = vpop.f32.mrb[0].mxu0
  %v421 = vadd.f32 0.0, %v420
  %v422 = vpop.f32.mrb[0].mxu0
  %423 = vmatprep.mubr.f32.mxu0 0.0
  %424 = vmatmul.mubr.f32.gmra.mrb[0].mxu0 %v21
  %v425 = vpop.f32.mrb[0].mxu0
  %v426 = vadd.f32 0.0, %v425
  %v427 = vpop.f32.mrb[0].mxu0
  %428 = vmatprep.mubr.f32.mxu0 0.0
  %429 = vmatmul.mubr.f32.gmra.mrb[0].mxu0 %v22
  %v430 = vpop.f32.mrb[0].mxu0
  %v431 = vadd.f32 0.0, %v430
  %v432 = vpop.f32.mrb[0].mxu0
  %433 = vmatprep.mubr.f32.mxu0 0.0
  %434 = vmatmul.mubr.f32.gmra.mrb[0].mxu0 %v23
  %v435 = vpop.f32.mrb[0].mxu0
  %v436 = vadd.f32 0.0, %v435
  %v437 = vpop.f32.mrb[0].mxu0
  %438 = vmatprep.mubr.f32.mxu0 0.0
  %439 = vmatmul.mubr.f32.gmra.mrb[0].mxu0 %v24
  %v440 = vpop.f32.mrb[0].mxu0
  %v441 = vadd.f32 0.0, %v440
  %v442 = vpop.f32.mrb[0].mxu0
  %443 = vmatprep.mubr.f32.mxu0 0.0
  %444 = vmatmul.mubr.f32.gmra.mrb[0].mxu0 %v25
  %v445 = vpop.f32.mrb[0].mxu0
  %v446 = vadd.f32 0.0, %v445
  %v447 = vpop.f32.mrb[0].mxu0
  %448 = vmatprep.mubr.f32.mxu0 0.0
  %449 = vmatmul.mubr.f32.gmra.mrb[0].mxu0 %v26
  %v450 = vpop.f32.mrb[0].mxu0
  %v451 = vadd.f32 0.0, %v450
  %v452 = vpop.f32.mrb[0].mxu0
  %453 = vmatprep.mubr.f32.mxu0 0.0
  %454 = vmatmul.mubr.f32.gmra.mrb[0].mxu0 %v27
  %v455 = vpop.f32.mrb[0].mxu0
  %v456 = vadd.f32 0.0, %v455
  %v457 = vpop.f32.mrb[0].mxu0
  %458 = vmatprep.mubr.f32.mxu0 0.0
  %459 = vmatmul.mubr.f32.gmra.mrb[0].mxu0 %v28
  %v460 = vpop.f32.mrb[0].mxu0
  %v461 = vadd.f32 0.0, %v460
  %v462 = vpop.f32.mrb[0].mxu0
  %463 = vmatprep.mubr.f32.mxu0 0.0
  %464 = vmatmul.mubr.f32.gmra.mrb[0].mxu0 %v29
  %v465 = vpop.f32.mrb[0].mxu0
  %v466 = vadd.f32 0.0, %v465
  %v467 = vpop.f32.mrb[0].mxu0
  %468 = vmatprep.mubr.f32.mxu0 0.0
  %469 = vmatmul.mubr.f32.gmra.mrb[0].mxu0 %v30
  %v470 = vpop.f32.mrb[0].mxu0
  %v471 = vadd.f32 0.0, %v470
  %v472 = vpop.f32.mrb[0].mxu0
  %473 = vmatprep.mubr.f32.mxu0 0.0
  %474 = vmatmul.mubr.f32.gmra.mrb[0].mxu0 %v31
  %v475 = vpop.f32.mrb[0].mxu0
  %v476 = vadd.f32 0.0, %v475
  %v477 = vpop.f32.mrb[0].mxu0
  %478 = vmatprep.mubr.f32.mxu0 0.0
  %479 = vmatmul.mubr.f32.gmra.mrb[0].mxu0 %v32
  %v480 = vpop.f32.mrb[0].mxu0
  %v481 = vadd.f32 0.0, %v480
  %v482 = vpop.f32.mrb[0].mxu0
  %483 = vdwg.mxu0
  %500 = vrot.lane.b32.xlu0 %v116, 32
  %v501 = vpop.permute.xlu0 %500
  %502 = vrot.lane.b32.xlu0 %v121, 32
  %v503 = vpop.permute.xlu0 %502
  %504 = vrot.lane.b32.xlu0 %v126, 32
  %v505 = vpop.permute.xlu0 %504
  %506 = vrot.lane.b32.xlu0 %v131, 32
  %v507 = vpop.permute.xlu0 %506
  %508 = vrot.lane.b32.xlu0 %v136, 32
  %v509 = vpop.permute.xlu0 %508
  %510 = vrot.lane.b32.xlu0 %v141, 32
  %v511 = vpop.permute.xlu0 %510
  %512 = vrot.lane.b32.xlu0 %v146, 32
  %v513 = vpop.permute.xlu0 %512
  %514 = vrot.lane.b32.xlu0 %v151, 32
  %v515 = vpop.permute.xlu0 %514
  %516 = vrot.lane.b32.xlu0 %v156, 32
  %v517 = vpop.permute.xlu0 %516
  %518 = vrot.lane.b32.xlu0 %v161, 32
  %v519 = vpop.permute.xlu0 %518
  %520 = vrot.lane.b32.xlu0 %v166, 32
  %v521 = vpop.permute.xlu0 %520
  %522 = vrot.lane.b32.xlu0 %v171, 32
  %v523 = vpop.permute.xlu0 %522
  %524 = vrot.lane.b32.xlu0 %v176, 32
  %v525 = vpop.permute.xlu0 %524
  %526 = vrot.lane.b32.xlu0 %v181, 32
  %v527 = vpop.permute.xlu0 %526
  %528 = vrot.lane.b32.xlu0 %v186, 32
  %v529 = vpop.permute.xlu0 %528
  %530 = vrot.lane.b32.xlu0 %v191, 32
  %v531 = vpop.permute.xlu0 %530
  %564 = vrot.lane.b32.xlu0 %v261, 64
  %v565 = vpop.permute.xlu0 %564
  %566 = vrot.lane.b32.xlu0 %v266, 64
  %v567 = vpop.permute.xlu0 %566
  %568 = vrot.lane.b32.xlu0 %v271, 64
  %v569 = vpop.permute.xlu0 %568
  %570 = vrot.lane.b32.xlu0 %v276, 64
  %v571 = vpop.permute.xlu0 %570
  %572 = vrot.lane.b32.xlu0 %v281, 64
  %v573 = vpop.permute.xlu0 %572
  %574 = vrot.lane.b32.xlu0 %v286, 64
  %v575 = vpop.permute.xlu0 %574
  %576 = vrot.lane.b32.xlu0 %v291, 64
  %v577 = vpop.permute.xlu0 %576
  %578 = vrot.lane.b32.xlu0 %v296, 64
  %v579 = vpop.permute.xlu0 %578
  %580 = vrot.lane.b32.xlu0 %v301, 64
  %v581 = vpop.permute.xlu0 %580
  %582 = vrot.lane.b32.xlu0 %v306, 64
  %v583 = vpop.permute.xlu0 %582
  %584 = vrot.lane.b32.xlu0 %v311, 64
  %v585 = vpop.permute.xlu0 %584
  %586 = vrot.lane.b32.xlu0 %v316, 64
  %v587 = vpop.permute.xlu0 %586
  %588 = vrot.lane.b32.xlu0 %v321, 64
  %v589 = vpop.permute.xlu0 %588
  %590 = vrot.lane.b32.xlu0 %v326, 64
  %v591 = vpop.permute.xlu0 %590
  %592 = vrot.lane.b32.xlu0 %v331, 64
  %v593 = vpop.permute.xlu0 %592
  %594 = vrot.lane.b32.xlu0 %v336, 64
  %v595 = vpop.permute.xlu0 %594
  %628 = vrot.lane.b32.xlu0 %v406, 96
  %v629 = vpop.permute.xlu0 %628
  %630 = vrot.lane.b32.xlu0 %v411, 96
  %v631 = vpop.permute.xlu0 %630
  %632 = vrot.lane.b32.xlu0 %v416, 96
  %v633 = vpop.permute.xlu0 %632
  %634 = vrot.lane.b32.xlu0 %v421, 96
  %v635 = vpop.permute.xlu0 %634
  %636 = vrot.lane.b32.xlu0 %v426, 96
  %v637 = vpop.permute.xlu0 %636
  %638 = vrot.lane.b32.xlu0 %v431, 96
  %v639 = vpop.permute.xlu0 %638
  %640 = vrot.lane.b32.xlu0 %v436, 96
  %v641 = vpop.permute.xlu0 %640
  %642 = vrot.lane.b32.xlu0 %v441, 96
  %v643 = vpop.permute.xlu0 %642
  %644 = vrot.lane.b32.xlu0 %v446, 96
  %v645 = vpop.permute.xlu0 %644
  %646 = vrot.lane.b32.xlu0 %v451, 96
  %v647 = vpop.permute.xlu0 %646
  %648 = vrot.lane.b32.xlu0 %v456, 96
  %v649 = vpop.permute.xlu0 %648
  %650 = vrot.lane.b32.xlu0 %v461, 96
  %v651 = vpop.permute.xlu0 %650
  %652 = vrot.lane.b32.xlu0 %v466, 96
  %v653 = vpop.permute.xlu0 %652
  %654 = vrot.lane.b32.xlu0 %v471, 96
  %v655 = vpop.permute.xlu0 %654
  %656 = vrot.lane.b32.xlu0 %v476, 96
  %v657 = vpop.permute.xlu0 %656
  %658 = vrot.lane.b32.xlu0 %v481, 96
  %v659 = vpop.permute.xlu0 %658
  %vm676 = vcmask 261120
  %v677 = vsel %vm676, %v33, %v501
  %v678 = vsel %vm676, %v34, %v503
  %v679 = vsel %vm676, %v35, %v505
  %v680 = vsel %vm676, %v36, %v507
  %v681 = vsel %vm676, %v37, %v509
  %v682 = vsel %vm676, %v38, %v511
  %v683 = vsel %vm676, %v39, %v513
  %v684 = vsel %vm676, %v40, %v515
  %v685 = vsel %vm676, %v41, %v517
  %v686 = vsel %vm676, %v42, %v519
  %v687 = vsel %vm676, %v43, %v521
  %v688 = vsel %vm676, %v44, %v523
  %v689 = vsel %vm676, %v45, %v525
  %v690 = vsel %vm676, %v46, %v527
  %v691 = vsel %vm676, %v47, %v529
  %v692 = vsel %vm676, %v48, %v531
  %vm693 = vcmask 523264
  %v694 = vsel %vm693, %v677, %v565
  %v695 = vsel %vm693, %v678, %v567
  %v696 = vsel %vm693, %v679, %v569
  %v697 = vsel %vm693, %v680, %v571
  %v698 = vsel %vm693, %v681, %v573
  %v699 = vsel %vm693, %v682, %v575
  %v700 = vsel %vm693, %v683, %v577
  %v701 = vsel %vm693, %v684, %v579
  %v702 = vsel %vm693, %v685, %v581
  %v703 = vsel %vm693, %v686, %v583
  %v704 = vsel %vm693, %v687, %v585
  %v705 = vsel %vm693, %v688, %v587
  %v706 = vsel %vm693, %v689, %v589
  %v707 = vsel %vm693, %v690, %v591
  %v708 = vsel %vm693, %v691, %v593
  %v709 = vsel %vm693, %v692, %v595
  %vm710 = vcmask 785408
  %v711 = vsel %vm710, %v694, %v629
  %v712 = vsel %vm710, %v695, %v631
  %v713 = vsel %vm710, %v696, %v633
  %v714 = vsel %vm710, %v697, %v635
  %v715 = vsel %vm710, %v698, %v637
  %v716 = vsel %vm710, %v699, %v639
  %v717 = vsel %vm710, %v700, %v641
  %v718 = vsel %vm710, %v701, %v643
  %v719 = vsel %vm710, %v702, %v645
  %v720 = vsel %vm710, %v703, %v647
  %v721 = vsel %vm710, %v704, %v649
  %v722 = vsel %vm710, %v705, %v651
  %v723 = vsel %vm710, %v706, %v653
  %v724 = vsel %vm710, %v707, %v655
  %v725 = vsel %vm710, %v708, %v657
  %v726 = vsel %vm710, %v709, %v659
  %v727 = vld [vmem:[%s2] sm:$0xff]
  %v728 = vld [vmem:[%s2 + $0x8] sm:$0xff]
  %v729 = vld [vmem:[%s2 + $0x10] sm:$0xff]
  %v730 = vld [vmem:[%s2 + $0x18] sm:$0xff]
  %v731 = vld [vmem:[%s2 + $0x20] sm:$0xff]
  %v732 = vld [vmem:[%s2 + $0x28] sm:$0xff]
  %v733 = vld [vmem:[%s2 + $0x30] sm:$0xff]
  %v734 = vld [vmem:[%s2 + $0x38] sm:$0xff]
  %v735 = vld [vmem:[%s2 + $0x40] sm:$0xff]
  %v736 = vld [vmem:[%s2 + $0x48] sm:$0xff]
  %v737 = vld [vmem:[%s2 + $0x50] sm:$0xff]
  %v738 = vld [vmem:[%s2 + $0x58] sm:$0xff]
  %v739 = vld [vmem:[%s2 + $0x60] sm:$0xff]
  %v740 = vld [vmem:[%s2 + $0x68] sm:$0xff]
  %v741 = vld [vmem:[%s2 + $0x70] sm:$0xff]
  %v742 = vld [vmem:[%s2 + $0x78] sm:$0xff]
  %743 = vmatprep.subr.mxu0 0.0
  %744 = vmatpush1.msra.mxu0 %v727
  %745 = vmatprep.subr.mxu0 0.0
  %746 = vmatpush1.msra.mxu0 %v728
  %747 = vmatprep.subr.mxu0 0.0
  %748 = vmatpush1.msra.mxu0 %v729
  %749 = vmatprep.subr.mxu0 0.0
  %750 = vmatpush1.msra.mxu0 %v730
  %751 = vmatprep.subr.mxu0 0.0
  %752 = vmatpush1.msra.mxu0 %v731
  %753 = vmatprep.subr.mxu0 0.0
  %754 = vmatpush1.msra.mxu0 %v732
  %755 = vmatprep.subr.mxu0 0.0
  %756 = vmatpush1.msra.mxu0 %v733
  %757 = vmatprep.subr.mxu0 0.0
  %758 = vmatpush1.msra.mxu0 %v734
  %759 = vmatprep.subr.mxu0 0.0
  %760 = vmatpush1.msra.mxu0 %v735
  %761 = vmatprep.subr.mxu0 0.0
  %762 = vmatpush1.msra.mxu0 %v736
  %763 = vmatprep.subr.mxu0 0.0
  %764 = vmatpush1.msra.mxu0 %v737
  %765 = vmatprep.subr.mxu0 0.0
  %766 = vmatpush1.msra.mxu0 %v738
  %767 = vmatprep.subr.mxu0 0.0
  %768 = vmatpush1.msra.mxu0 %v739
  %769 = vmatprep.subr.mxu0 0.0
  %770 = vmatpush1.msra.mxu0 %v740
  %771 = vmatprep.subr.mxu0 0.0
  %772 = vmatpush1.msra.mxu0 %v741
  %773 = vmatprep.subr.mxu0 0.0
  %774 = vmatpush1.msra.mxu0 %v742
  %775 = vmatprep.subr.mxu0 0.0
  %776 = vmatpush1.msra.mxu0 0.0
  %777 = vmatprep.subr.mxu0 0.0
  %778 = vmatpush1.msra.mxu0 0.0
  %779 = vmatprep.subr.mxu0 0.0
  %780 = vmatpush1.msra.mxu0 0.0
  %781 = vmatprep.subr.mxu0 0.0
  %782 = vmatpush1.msra.mxu0 0.0
  %783 = vmatprep.subr.mxu0 0.0
  %784 = vmatpush1.msra.mxu0 0.0
  %785 = vmatprep.subr.mxu0 0.0
  %786 = vmatpush1.msra.mxu0 0.0
  %787 = vmatprep.subr.mxu0 0.0
  %788 = vmatpush1.msra.mxu0 0.0
  %789 = vmatprep.subr.mxu0 0.0
  %790 = vmatpush1.msra.mxu0 0.0
  %791 = vmatprep.subr.mxu0 0.0
  %792 = vmatpush1.msra.mxu0 0.0
  %793 = vmatprep.subr.mxu0 0.0
  %794 = vmatpush1.msra.mxu0 0.0
  %795 = vmatprep.subr.mxu0 0.0
  %796 = vmatpush1.msra.mxu0 0.0
  %797 = vmatprep.subr.mxu0 0.0
  %798 = vmatpush1.msra.mxu0 0.0
  %799 = vmatprep.subr.mxu0 0.0
  %800 = vmatpush1.msra.mxu0 0.0
  %801 = vmatprep.subr.mxu0 0.0
  %802 = vmatpush1.msra.mxu0 0.0
  %803 = vmatprep.subr.mxu0 0.0
  %804 = vmatpush1.msra.mxu0 0.0
  %805 = vmatprep.subr.mxu0 0.0
  %806 = vmatpush1.msra.mxu0 0.0
  %807 = vmatprep.mubr.f32.mxu0 0.0
  %808 = vmatmul.mubr.f32.gmra.mrb[0].mxu0 %v711
  %v809 = vpop.f32.mrb[0].mxu0
  %v810 = vadd.f32 0.0, %v809
  %v811 = vpop.f32.mrb[0].mxu0
  %812 = vmatprep.mubr.f32.mxu0 0.0
  %813 = vmatmul.mubr.f32.gmra.mrb[0].mxu0 %v712
  %v814 = vpop.f32.mrb[0].mxu0
  %v815 = vadd.f32 0.0, %v814
  %v816 = vpop.f32.mrb[0].mxu0
  %817 = vmatprep.mubr.f32.mxu0 0.0
  %818 = vmatmul.mubr.f32.gmra.mrb[0].mxu0 %v713
  %v819 = vpop.f32.mrb[0].mxu0
  %v820 = vadd.f32 0.0, %v819
  %v821 = vpop.f32.mrb[0].mxu0
  %822 = vmatprep.mubr.f32.mxu0 0.0
  %823 = vmatmul.mubr.f32.gmra.mrb[0].mxu0 %v714
  %v824 = vpop.f32.mrb[0].mxu0
  %v825 = vadd.f32 0.0, %v824
  %v826 = vpop.f32.mrb[0].mxu0
  %827 = vmatprep.mubr.f32.mxu0 0.0
  %828 = vmatmul.mubr.f32.gmra.mrb[0].mxu0 %v715
  %v829 = vpop.f32.mrb[0].mxu0
  %v830 = vadd.f32 0.0, %v829
  %v831 = vpop.f32.mrb[0].mxu0
  %832 = vmatprep.mubr.f32.mxu0 0.0
  %833 = vmatmul.mubr.f32.gmra.mrb[0].mxu0 %v716
  %v834 = vpop.f32.mrb[0].mxu0
  %v835 = vadd.f32 0.0, %v834
  %v836 = vpop.f32.mrb[0].mxu0
  %837 = vmatprep.mubr.f32.mxu0 0.0
  %838 = vmatmul.mubr.f32.gmra.mrb[0].mxu0 %v717
  %v839 = vpop.f32.mrb[0].mxu0
  %v840 = vadd.f32 0.0, %v839
  %v841 = vpop.f32.mrb[0].mxu0
  %842 = vmatprep.mubr.f32.mxu0 0.0
  %843 = vmatmul.mubr.f32.gmra.mrb[0].mxu0 %v718
  %v844 = vpop.f32.mrb[0].mxu0
  %v845 = vadd.f32 0.0, %v844
  %v846 = vpop.f32.mrb[0].mxu0
  %847 = vmatprep.mubr.f32.mxu0 0.0
  %848 = vmatmul.mubr.f32.gmra.mrb[0].mxu0 %v719
  %v849 = vpop.f32.mrb[0].mxu0
  %v850 = vadd.f32 0.0, %v849
  %v851 = vpop.f32.mrb[0].mxu0
  %852 = vmatprep.mubr.f32.mxu0 0.0
  %853 = vmatmul.mubr.f32.gmra.mrb[0].mxu0 %v720
  %v854 = vpop.f32.mrb[0].mxu0
  %v855 = vadd.f32 0.0, %v854
  %v856 = vpop.f32.mrb[0].mxu0
  %857 = vmatprep.mubr.f32.mxu0 0.0
  %858 = vmatmul.mubr.f32.gmra.mrb[0].mxu0 %v721
  %v859 = vpop.f32.mrb[0].mxu0
  %v860 = vadd.f32 0.0, %v859
  %v861 = vpop.f32.mrb[0].mxu0
  %862 = vmatprep.mubr.f32.mxu0 0.0
  %863 = vmatmul.mubr.f32.gmra.mrb[0].mxu0 %v722
  %v864 = vpop.f32.mrb[0].mxu0
  %v865 = vadd.f32 0.0, %v864
  %v866 = vpop.f32.mrb[0].mxu0
  %867 = vmatprep.mubr.f32.mxu0 0.0
  %868 = vmatmul.mubr.f32.gmra.mrb[0].mxu0 %v723
  %v869 = vpop.f32.mrb[0].mxu0
  %v870 = vadd.f32 0.0, %v869
  %v871 = vpop.f32.mrb[0].mxu0
  %872 = vmatprep.mubr.f32.mxu0 0.0
  %873 = vmatmul.mubr.f32.gmra.mrb[0].mxu0 %v724
  %v874 = vpop.f32.mrb[0].mxu0
  %v875 = vadd.f32 0.0, %v874
  %v876 = vpop.f32.mrb[0].mxu0
  %877 = vmatprep.mubr.f32.mxu0 0.0
  %878 = vmatmul.mubr.f32.gmra.mrb[0].mxu0 %v725
  %v879 = vpop.f32.mrb[0].mxu0
  %v880 = vadd.f32 0.0, %v879
  %v881 = vpop.f32.mrb[0].mxu0
  %882 = vmatprep.mubr.f32.mxu0 0.0
  %883 = vmatmul.mubr.f32.gmra.mrb[0].mxu0 %v726
  %v884 = vpop.f32.mrb[0].mxu0
  %v885 = vadd.f32 0.0, %v884
  %v886 = vpop.f32.mrb[0].mxu0
  %887 = vdwg.mxu0
  %v888 = vmax.f32 %v810, 0.0
  %v889 = vmax.f32 %v815, 0.0
  %v890 = vmax.f32 %v820, 0.0
  %v891 = vmax.f32 %v825, 0.0
  %v892 = vmax.f32 %v830, 0.0
  %v893 = vmax.f32 %v835, 0.0
  %v894 = vmax.f32 %v840, 0.0
  %v895 = vmax.f32 %v845, 0.0
  %v896 = vmax.f32 %v850, 0.0
  %v897 = vmax.f32 %v855, 0.0
  %v898 = vmax.f32 %v860, 0.0
  %v899 = vmax.f32 %v865, 0.0
  %v900 = vmax.f32 %v870, 0.0
  %v901 = vmax.f32 %v875, 0.0
  %v902 = vmax.f32 %v880, 0.0
  %v903 = vmax.f32 %v885, 0.0
  %904 = vmatprep.subr.mxu0 0.0
  %905 = vmatpush1.msra.mxu0 %v888
  %906 = vmatprep.subr.mxu0 0.0
  %907 = vmatpush1.msra.mxu0 %v889
  %908 = vmatprep.subr.mxu0 0.0
  %909 = vmatpush1.msra.mxu0 %v890
  %910 = vmatprep.subr.mxu0 0.0
  %911 = vmatpush1.msra.mxu0 %v891
  %912 = vmatprep.subr.mxu0 0.0
  %913 = vmatpush1.msra.mxu0 %v892
  %914 = vmatprep.subr.mxu0 0.0
  %915 = vmatpush1.msra.mxu0 %v893
  %916 = vmatprep.subr.mxu0 0.0
  %917 = vmatpush1.msra.mxu0 %v894
  %918 = vmatprep.subr.mxu0 0.0
  %919 = vmatpush1.msra.mxu0 %v895
  %920 = vmatprep.subr.mxu0 0.0
  %921 = vmatpush1.msra.mxu0 %v896
  %922 = vmatprep.subr.mxu0 0.0
  %923 = vmatpush1.msra.mxu0 %v897
  %924 = vmatprep.subr.mxu0 0.0
  %925 = vmatpush1.msra.mxu0 %v898
  %926 = vmatprep.subr.mxu0 0.0
  %927 = vmatpush1.msra.mxu0 %v899
  %928 = vmatprep.subr.mxu0 0.0
  %929 = vmatpush1.msra.mxu0 %v900
  %930 = vmatprep.subr.mxu0 0.0
  %931 = vmatpush1.msra.mxu0 %v901
  %932 = vmatprep.subr.mxu0 0.0
  %933 = vmatpush1.msra.mxu0 %v902
  %934 = vmatprep.subr.mxu0 0.0
  %935 = vmatpush1.msra.mxu0 %v903
  %936 = vmatprep.subr.mxu0 0.0
  %937 = vmatpush1.msra.mxu0 0.0
  %938 = vmatprep.subr.mxu0 0.0
  %939 = vmatpush1.msra.mxu0 0.0
  %940 = vmatprep.subr.mxu0 0.0
  %941 = vmatpush1.msra.mxu0 0.0
  %942 = vmatprep.subr.mxu0 0.0
  %943 = vmatpush1.msra.mxu0 0.0
  %944 = vmatprep.subr.mxu0 0.0
  %945 = vmatpush1.msra.mxu0 0.0
  %946 = vmatprep.subr.mxu0 0.0
  %947 = vmatpush1.msra.mxu0 0.0
  %948 = vmatprep.subr.mxu0 0.0
  %949 = vmatpush1.msra.mxu0 0.0
  %950 = vmatprep.subr.mxu0 0.0
  %951 = vmatpush1.msra.mxu0 0.0
  %952 = vmatprep.subr.mxu0 0.0
  %953 = vmatpush1.msra.mxu0 0.0
  %954 = vmatprep.subr.mxu0 0.0
  %955 = vmatpush1.msra.mxu0 0.0
  %956 = vmatprep.subr.mxu0 0.0
  %957 = vmatpush1.msra.mxu0 0.0
  %958 = vmatprep.subr.mxu0 0.0
  %959 = vmatpush1.msra.mxu0 0.0
  %960 = vmatprep.subr.mxu0 0.0
  %961 = vmatpush1.msra.mxu0 0.0
  %962 = vmatprep.subr.mxu0 0.0
  %963 = vmatpush1.msra.mxu0 0.0
  %964 = vmatprep.subr.mxu0 0.0
  %965 = vmatpush1.msra.mxu0 0.0
  %966 = vmatprep.subr.mxu0 0.0
  %967 = vmatpush1.msra.mxu0 0.0
  %968 = vmatprep.mubr.f32.mxu0 0.0
  %969 = vmatmul.mubr.f32.gmra.mrb[0].mxu0 %v17
  %v970 = vpop.f32.mrb[0].mxu0
  %v971 = vadd.f32 0.0, %v970
  %v972 = vpop.f32.mrb[0].mxu0
  %973 = vmatprep.mubr.f32.mxu0 0.0
  %974 = vmatmul.mubr.f32.gmra.mrb[0].mxu0 %v18
  %v975 = vpop.f32.mrb[0].mxu0
  %v976 = vadd.f32 0.0, %v975
  %v977 = vpop.f32.mrb[0].mxu0
  %978 = vmatprep.mubr.f32.mxu0 0.0
  %979 = vmatmul.mubr.f32.gmra.mrb[0].mxu0 %v19
  %v980 = vpop.f32.mrb[0].mxu0
  %v981 = vadd.f32 0.0, %v980
  %v982 = vpop.f32.mrb[0].mxu0
  %983 = vmatprep.mubr.f32.mxu0 0.0
  %984 = vmatmul.mubr.f32.gmra.mrb[0].mxu0 %v20
  %v985 = vpop.f32.mrb[0].mxu0
  %v986 = vadd.f32 0.0, %v985
  %v987 = vpop.f32.mrb[0].mxu0
  %988 = vmatprep.mubr.f32.mxu0 0.0
  %989 = vmatmul.mubr.f32.gmra.mrb[0].mxu0 %v21
  %v990 = vpop.f32.mrb[0].mxu0
  %v991 = vadd.f32 0.0, %v990
  %v992 = vpop.f32.mrb[0].mxu0
  %993 = vmatprep.mubr.f32.mxu0 0.0
  %994 = vmatmul.mubr.f32.gmra.mrb[0].mxu0 %v22
  %v995 = vpop.f32.mrb[0].mxu0
  %v996 = vadd.f32 0.0, %v995
  %v997 = vpop.f32.mrb[0].mxu0
  %998 = vmatprep.mubr.f32.mxu0 0.0
  %999 = vmatmul.mubr.f32.gmra.mrb[0].mxu0 %v23
  %v1000 = vpop.f32.mrb[0].mxu0
  %v1001 = vadd.f32 0.0, %v1000
  %v1002 = vpop.f32.mrb[0].mxu0
  %1003 = vmatprep.mubr.f32.mxu0 0.0
  %1004 = vmatmul.mubr.f32.gmra.mrb[0].mxu0 %v24
  %v1005 = vpop.f32.mrb[0].mxu0
  %v1006 = vadd.f32 0.0, %v1005
  %v1007 = vpop.f32.mrb[0].mxu0
  %1008 = vmatprep.mubr.f32.mxu0 0.0
  %1009 = vmatmul.mubr.f32.gmra.mrb[0].mxu0 %v25
  %v1010 = vpop.f32.mrb[0].mxu0
  %v1011 = vadd.f32 0.0, %v1010
  %v1012 = vpop.f32.mrb[0].mxu0
  %1013 = vmatprep.mubr.f32.mxu0 0.0
  %1014 = vmatmul.mubr.f32.gmra.mrb[0].mxu0 %v26
  %v1015 = vpop.f32.mrb[0].mxu0
  %v1016 = vadd.f32 0.0, %v1015
  %v1017 = vpop.f32.mrb[0].mxu0
  %1018 = vmatprep.mubr.f32.mxu0 0.0
  %1019 = vmatmul.mubr.f32.gmra.mrb[0].mxu0 %v27
  %v1020 = vpop.f32.mrb[0].mxu0
  %v1021 = vadd.f32 0.0, %v1020
  %v1022 = vpop.f32.mrb[0].mxu0
  %1023 = vmatprep.mubr.f32.mxu0 0.0
  %1024 = vmatmul.mubr.f32.gmra.mrb[0].mxu0 %v28
  %v1025 = vpop.f32.mrb[0].mxu0
  %v1026 = vadd.f32 0.0, %v1025
  %v1027 = vpop.f32.mrb[0].mxu0
  %1028 = vmatprep.mubr.f32.mxu0 0.0
  %1029 = vmatmul.mubr.f32.gmra.mrb[0].mxu0 %v29
  %v1030 = vpop.f32.mrb[0].mxu0
  %v1031 = vadd.f32 0.0, %v1030
  %v1032 = vpop.f32.mrb[0].mxu0
  %1033 = vmatprep.mubr.f32.mxu0 0.0
  %1034 = vmatmul.mubr.f32.gmra.mrb[0].mxu0 %v30
  %v1035 = vpop.f32.mrb[0].mxu0
  %v1036 = vadd.f32 0.0, %v1035
  %v1037 = vpop.f32.mrb[0].mxu0
  %1038 = vmatprep.mubr.f32.mxu0 0.0
  %1039 = vmatmul.mubr.f32.gmra.mrb[0].mxu0 %v31
  %v1040 = vpop.f32.mrb[0].mxu0
  %v1041 = vadd.f32 0.0, %v1040
  %v1042 = vpop.f32.mrb[0].mxu0
  %1043 = vmatprep.mubr.f32.mxu0 0.0
  %1044 = vmatmul.mubr.f32.gmra.mrb[0].mxu0 %v32
  %v1045 = vpop.f32.mrb[0].mxu0
  %v1046 = vadd.f32 0.0, %v1045
  %v1047 = vpop.f32.mrb[0].mxu0
  %1048 = vdwg.mxu0
  %1049 = vmatprep.subr.mxu0 0.0
  %1050 = vmatpush1.msra.mxu0 %v971
  %1051 = vmatprep.subr.mxu0 0.0
  %1052 = vmatpush1.msra.mxu0 %v976
  %1053 = vmatprep.subr.mxu0 0.0
  %1054 = vmatpush1.msra.mxu0 %v981
  %1055 = vmatprep.subr.mxu0 0.0
  %1056 = vmatpush1.msra.mxu0 %v986
  %1057 = vmatprep.subr.mxu0 0.0
  %1058 = vmatpush1.msra.mxu0 %v991
  %1059 = vmatprep.subr.mxu0 0.0
  %1060 = vmatpush1.msra.mxu0 %v996
  %1061 = vmatprep.subr.mxu0 0.0
  %1062 = vmatpush1.msra.mxu0 %v1001
  %1063 = vmatprep.subr.mxu0 0.0
  %1064 = vmatpush1.msra.mxu0 %v1006
  %1065 = vmatprep.subr.mxu0 0.0
  %1066 = vmatpush1.msra.mxu0 %v1011
  %1067 = vmatprep.subr.mxu0 0.0
  %1068 = vmatpush1.msra.mxu0 %v1016
  %1069 = vmatprep.subr.mxu0 0.0
  %1070 = vmatpush1.msra.mxu0 %v1021
  %1071 = vmatprep.subr.mxu0 0.0
  %1072 = vmatpush1.msra.mxu0 %v1026
  %1073 = vmatprep.subr.mxu0 0.0
  %1074 = vmatpush1.msra.mxu0 %v1031
  %1075 = vmatprep.subr.mxu0 0.0
  %1076 = vmatpush1.msra.mxu0 %v1036
  %1077 = vmatprep.subr.mxu0 0.0
  %1078 = vmatpush1.msra.mxu0 %v1041
  %1079 = vmatprep.subr.mxu0 0.0
  %1080 = vmatpush1.msra.mxu0 %v1046
  %1081 = vmatprep.subr.mxu0 0.0
  %1082 = vmatpush1.msra.mxu0 0.0
  %1083 = vmatprep.subr.mxu0 0.0
  %1084 = vmatpush1.msra.mxu0 0.0
  %1085 = vmatprep.subr.mxu0 0.0
  %1086 = vmatpush1.msra.mxu0 0.0
  %1087 = vmatprep.subr.mxu0 0.0
  %1088 = vmatpush1.msra.mxu0 0.0
  %1089 = vmatprep.subr.mxu0 0.0
  %1090 = vmatpush1.msra.mxu0 0.0
  %1091 = vmatprep.subr.mxu0 0.0
  %1092 = vmatpush1.msra.mxu0 0.0
  %1093 = vmatprep.subr.mxu0 0.0
  %1094 = vmatpush1.msra.mxu0 0.0
  %1095 = vmatprep.subr.mxu0 0.0
  %1096 = vmatpush1.msra.mxu0 0.0
  %1097 = vmatprep.subr.mxu0 0.0
  %1098 = vmatpush1.msra.mxu0 0.0
  %1099 = vmatprep.subr.mxu0 0.0
  %1100 = vmatpush1.msra.mxu0 0.0
  %1101 = vmatprep.subr.mxu0 0.0
  %1102 = vmatpush1.msra.mxu0 0.0
  %1103 = vmatprep.subr.mxu0 0.0
  %1104 = vmatpush1.msra.mxu0 0.0
  %1105 = vmatprep.subr.mxu0 0.0
  %1106 = vmatpush1.msra.mxu0 0.0
  %1107 = vmatprep.subr.mxu0 0.0
  %1108 = vmatpush1.msra.mxu0 0.0
  %1109 = vmatprep.subr.mxu0 0.0
  %1110 = vmatpush1.msra.mxu0 0.0
  %1111 = vmatprep.subr.mxu0 0.0
  %1112 = vmatpush1.msra.mxu0 0.0
  %1113 = vmatprep.mubr.f32.mxu0 0.0
  %1114 = vmatmul.mubr.f32.gmra.mrb[0].mxu0 %v17
  %v1115 = vpop.f32.mrb[0].mxu0
  %v1116 = vadd.f32 0.0, %v1115
  %v1117 = vpop.f32.mrb[0].mxu0
  %1118 = vmatprep.mubr.f32.mxu0 0.0
  %1119 = vmatmul.mubr.f32.gmra.mrb[0].mxu0 %v18
  %v1120 = vpop.f32.mrb[0].mxu0
  %v1121 = vadd.f32 0.0, %v1120
  %v1122 = vpop.f32.mrb[0].mxu0
  %1123 = vmatprep.mubr.f32.mxu0 0.0
  %1124 = vmatmul.mubr.f32.gmra.mrb[0].mxu0 %v19
  %v1125 = vpop.f32.mrb[0].mxu0
  %v1126 = vadd.f32 0.0, %v1125
  %v1127 = vpop.f32.mrb[0].mxu0
  %1128 = vmatprep.mubr.f32.mxu0 0.0
  %1129 = vmatmul.mubr.f32.gmra.mrb[0].mxu0 %v20
  %v1130 = vpop.f32.mrb[0].mxu0
  %v1131 = vadd.f32 0.0, %v1130
  %v1132 = vpop.f32.mrb[0].mxu0
  %1133 = vmatprep.mubr.f32.mxu0 0.0
  %1134 = vmatmul.mubr.f32.gmra.mrb[0].mxu0 %v21
  %v1135 = vpop.f32.mrb[0].mxu0
  %v1136 = vadd.f32 0.0, %v1135
  %v1137 = vpop.f32.mrb[0].mxu0
  %1138 = vmatprep.mubr.f32.mxu0 0.0
  %1139 = vmatmul.mubr.f32.gmra.mrb[0].mxu0 %v22
  %v1140 = vpop.f32.mrb[0].mxu0
  %v1141 = vadd.f32 0.0, %v1140
  %v1142 = vpop.f32.mrb[0].mxu0
  %1143 = vmatprep.mubr.f32.mxu0 0.0
  %1144 = vmatmul.mubr.f32.gmra.mrb[0].mxu0 %v23
  %v1145 = vpop.f32.mrb[0].mxu0
  %v1146 = vadd.f32 0.0, %v1145
  %v1147 = vpop.f32.mrb[0].mxu0
  %1148 = vmatprep.mubr.f32.mxu0 0.0
  %1149 = vmatmul.mubr.f32.gmra.mrb[0].mxu0 %v24
  %v1150 = vpop.f32.mrb[0].mxu0
  %v1151 = vadd.f32 0.0, %v1150
  %v1152 = vpop.f32.mrb[0].mxu0
  %1153 = vmatprep.mubr.f32.mxu0 0.0
  %1154 = vmatmul.mubr.f32.gmra.mrb[0].mxu0 %v25
  %v1155 = vpop.f32.mrb[0].mxu0
  %v1156 = vadd.f32 0.0, %v1155
  %v1157 = vpop.f32.mrb[0].mxu0
  %1158 = vmatprep.mubr.f32.mxu0 0.0
  %1159 = vmatmul.mubr.f32.gmra.mrb[0].mxu0 %v26
  %v1160 = vpop.f32.mrb[0].mxu0
  %v1161 = vadd.f32 0.0, %v1160
  %v1162 = vpop.f32.mrb[0].mxu0
  %1163 = vmatprep.mubr.f32.mxu0 0.0
  %1164 = vmatmul.mubr.f32.gmra.mrb[0].mxu0 %v27
  %v1165 = vpop.f32.mrb[0].mxu0
  %v1166 = vadd.f32 0.0, %v1165
  %v1167 = vpop.f32.mrb[0].mxu0
  %1168 = vmatprep.mubr.f32.mxu0 0.0
  %1169 = vmatmul.mubr.f32.gmra.mrb[0].mxu0 %v28
  %v1170 = vpop.f32.mrb[0].mxu0
  %v1171 = vadd.f32 0.0, %v1170
  %v1172 = vpop.f32.mrb[0].mxu0
  %1173 = vmatprep.mubr.f32.mxu0 0.0
  %1174 = vmatmul.mubr.f32.gmra.mrb[0].mxu0 %v29
  %v1175 = vpop.f32.mrb[0].mxu0
  %v1176 = vadd.f32 0.0, %v1175
  %v1177 = vpop.f32.mrb[0].mxu0
  %1178 = vmatprep.mubr.f32.mxu0 0.0
  %1179 = vmatmul.mubr.f32.gmra.mrb[0].mxu0 %v30
  %v1180 = vpop.f32.mrb[0].mxu0
  %v1181 = vadd.f32 0.0, %v1180
  %v1182 = vpop.f32.mrb[0].mxu0
  %1183 = vmatprep.mubr.f32.mxu0 0.0
  %1184 = vmatmul.mubr.f32.gmra.mrb[0].mxu0 %v31
  %v1185 = vpop.f32.mrb[0].mxu0
  %v1186 = vadd.f32 0.0, %v1185
  %v1187 = vpop.f32.mrb[0].mxu0
  %1188 = vmatprep.mubr.f32.mxu0 0.0
  %1189 = vmatmul.mubr.f32.gmra.mrb[0].mxu0 %v32
  %v1190 = vpop.f32.mrb[0].mxu0
  %v1191 = vadd.f32 0.0, %v1190
  %v1192 = vpop.f32.mrb[0].mxu0
  %1193 = vdwg.mxu0
  %1194 = vmatprep.subr.mxu0 0.0
  %1195 = vmatpush1.msra.mxu0 %v1116
  %1196 = vmatprep.subr.mxu0 0.0
  %1197 = vmatpush1.msra.mxu0 %v1121
  %1198 = vmatprep.subr.mxu0 0.0
  %1199 = vmatpush1.msra.mxu0 %v1126
  %1200 = vmatprep.subr.mxu0 0.0
  %1201 = vmatpush1.msra.mxu0 %v1131
  %1202 = vmatprep.subr.mxu0 0.0
  %1203 = vmatpush1.msra.mxu0 %v1136
  %1204 = vmatprep.subr.mxu0 0.0
  %1205 = vmatpush1.msra.mxu0 %v1141
  %1206 = vmatprep.subr.mxu0 0.0
  %1207 = vmatpush1.msra.mxu0 %v1146
  %1208 = vmatprep.subr.mxu0 0.0
  %1209 = vmatpush1.msra.mxu0 %v1151
  %1210 = vmatprep.subr.mxu0 0.0
  %1211 = vmatpush1.msra.mxu0 %v1156
  %1212 = vmatprep.subr.mxu0 0.0
  %1213 = vmatpush1.msra.mxu0 %v1161
  %1214 = vmatprep.subr.mxu0 0.0
  %1215 = vmatpush1.msra.mxu0 %v1166
  %1216 = vmatprep.subr.mxu0 0.0
  %1217 = vmatpush1.msra.mxu0 %v1171
  %1218 = vmatprep.subr.mxu0 0.0
  %1219 = vmatpush1.msra.mxu0 %v1176
  %1220 = vmatprep.subr.mxu0 0.0
  %1221 = vmatpush1.msra.mxu0 %v1181
  %1222 = vmatprep.subr.mxu0 0.0
  %1223 = vmatpush1.msra.mxu0 %v1186
  %1224 = vmatprep.subr.mxu0 0.0
  %1225 = vmatpush1.msra.mxu0 %v1191
  %1226 = vmatprep.subr.mxu0 0.0
  %1227 = vmatpush1.msra.mxu0 0.0
  %1228 = vmatprep.subr.mxu0 0.0
  %1229 = vmatpush1.msra.mxu0 0.0
  %1230 = vmatprep.subr.mxu0 0.0
  %1231 = vmatpush1.msra.mxu0 0.0
  %1232 = vmatprep.subr.mxu0 0.0
  %1233 = vmatpush1.msra.mxu0 0.0
  %1234 = vmatprep.subr.mxu0 0.0
  %1235 = vmatpush1.msra.mxu0 0.0
  %1236 = vmatprep.subr.mxu0 0.0
  %1237 = vmatpush1.msra.mxu0 0.0
  %1238 = vmatprep.subr.mxu0 0.0
  %1239 = vmatpush1.msra.mxu0 0.0
  %1240 = vmatprep.subr.mxu0 0.0
  %1241 = vmatpush1.msra.mxu0 0.0
  %1242 = vmatprep.subr.mxu0 0.0
  %1243 = vmatpush1.msra.mxu0 0.0
  %1244 = vmatprep.subr.mxu0 0.0
  %1245 = vmatpush1.msra.mxu0 0.0
  %1246 = vmatprep.subr.mxu0 0.0
  %1247 = vmatpush1.msra.mxu0 0.0
  %1248 = vmatprep.subr.mxu0 0.0
  %1249 = vmatpush1.msra.mxu0 0.0
  %1250 = vmatprep.subr.mxu0 0.0
  %1251 = vmatpush1.msra.mxu0 0.0
  %1252 = vmatprep.subr.mxu0 0.0
  %1253 = vmatpush1.msra.mxu0 0.0
  %1254 = vmatprep.subr.mxu0 0.0
  %1255 = vmatpush1.msra.mxu0 0.0
  %1256 = vmatprep.subr.mxu0 0.0
  %1257 = vmatpush1.msra.mxu0 0.0
  %1258 = vmatprep.mubr.f32.mxu0 0.0
  %1259 = vmatmul.mubr.f32.gmra.mrb[0].mxu0 %v17
  %v1260 = vpop.f32.mrb[0].mxu0
  %v1261 = vadd.f32 0.0, %v1260
  %v1262 = vpop.f32.mrb[0].mxu0
  %1263 = vmatprep.mubr.f32.mxu0 0.0
  %1264 = vmatmul.mubr.f32.gmra.mrb[0].mxu0 %v18
  %v1265 = vpop.f32.mrb[0].mxu0
  %v1266 = vadd.f32 0.0, %v1265
  %v1267 = vpop.f32.mrb[0].mxu0
  %1268 = vmatprep.mubr.f32.mxu0 0.0
  %1269 = vmatmul.mubr.f32.gmra.mrb[0].mxu0 %v19
  %v1270 = vpop.f32.mrb[0].mxu0
  %v1271 = vadd.f32 0.0, %v1270
  %v1272 = vpop.f32.mrb[0].mxu0
  %1273 = vmatprep.mubr.f32.mxu0 0.0
  %1274 = vmatmul.mubr.f32.gmra.mrb[0].mxu0 %v20
  %v1275 = vpop.f32.mrb[0].mxu0
  %v1276 = vadd.f32 0.0, %v1275
  %v1277 = vpop.f32.mrb[0].mxu0
  %1278 = vmatprep.mubr.f32.mxu0 0.0
  %1279 = vmatmul.mubr.f32.gmra.mrb[0].mxu0 %v21
  %v1280 = vpop.f32.mrb[0].mxu0
  %v1281 = vadd.f32 0.0, %v1280
  %v1282 = vpop.f32.mrb[0].mxu0
  %1283 = vmatprep.mubr.f32.mxu0 0.0
  %1284 = vmatmul.mubr.f32.gmra.mrb[0].mxu0 %v22
  %v1285 = vpop.f32.mrb[0].mxu0
  %v1286 = vadd.f32 0.0, %v1285
  %v1287 = vpop.f32.mrb[0].mxu0
  %1288 = vmatprep.mubr.f32.mxu0 0.0
  %1289 = vmatmul.mubr.f32.gmra.mrb[0].mxu0 %v23
  %v1290 = vpop.f32.mrb[0].mxu0
  %v1291 = vadd.f32 0.0, %v1290
  %v1292 = vpop.f32.mrb[0].mxu0
  %1293 = vmatprep.mubr.f32.mxu0 0.0
  %1294 = vmatmul.mubr.f32.gmra.mrb[0].mxu0 %v24
  %v1295 = vpop.f32.mrb[0].mxu0
  %v1296 = vadd.f32 0.0, %v1295
  %v1297 = vpop.f32.mrb[0].mxu0
  %1298 = vmatprep.mubr.f32.mxu0 0.0
  %1299 = vmatmul.mubr.f32.gmra.mrb[0].mxu0 %v25
  %v1300 = vpop.f32.mrb[0].mxu0
  %v1301 = vadd.f32 0.0, %v1300
  %v1302 = vpop.f32.mrb[0].mxu0
  %1303 = vmatprep.mubr.f32.mxu0 0.0
  %1304 = vmatmul.mubr.f32.gmra.mrb[0].mxu0 %v26
  %v1305 = vpop.f32.mrb[0].mxu0
  %v1306 = vadd.f32 0.0, %v1305
  %v1307 = vpop.f32.mrb[0].mxu0
  %1308 = vmatprep.mubr.f32.mxu0 0.0
  %1309 = vmatmul.mubr.f32.gmra.mrb[0].mxu0 %v27
  %v1310 = vpop.f32.mrb[0].mxu0
  %v1311 = vadd.f32 0.0, %v1310
  %v1312 = vpop.f32.mrb[0].mxu0
  %1313 = vmatprep.mubr.f32.mxu0 0.0
  %1314 = vmatmul.mubr.f32.gmra.mrb[0].mxu0 %v28
  %v1315 = vpop.f32.mrb[0].mxu0
  %v1316 = vadd.f32 0.0, %v1315
  %v1317 = vpop.f32.mrb[0].mxu0
  %1318 = vmatprep.mubr.f32.mxu0 0.0
  %1319 = vmatmul.mubr.f32.gmra.mrb[0].mxu0 %v29
  %v1320 = vpop.f32.mrb[0].mxu0
  %v1321 = vadd.f32 0.0, %v1320
  %v1322 = vpop.f32.mrb[0].mxu0
  %1323 = vmatprep.mubr.f32.mxu0 0.0
  %1324 = vmatmul.mubr.f32.gmra.mrb[0].mxu0 %v30
  %v1325 = vpop.f32.mrb[0].mxu0
  %v1326 = vadd.f32 0.0, %v1325
  %v1327 = vpop.f32.mrb[0].mxu0
  %1328 = vmatprep.mubr.f32.mxu0 0.0
  %1329 = vmatmul.mubr.f32.gmra.mrb[0].mxu0 %v31
  %v1330 = vpop.f32.mrb[0].mxu0
  %v1331 = vadd.f32 0.0, %v1330
  %v1332 = vpop.f32.mrb[0].mxu0
  %1333 = vmatprep.mubr.f32.mxu0 0.0
  %1334 = vmatmul.mubr.f32.gmra.mrb[0].mxu0 %v32
  %v1335 = vpop.f32.mrb[0].mxu0
  %v1336 = vadd.f32 0.0, %v1335
  %v1337 = vpop.f32.mrb[0].mxu0
  %1338 = vdwg.mxu0
  %1355 = vrot.lane.b32.xlu0 %v971, 16
  %v1356 = vpop.permute.xlu0 %1355
  %1357 = vrot.lane.b32.xlu0 %v976, 16
  %v1358 = vpop.permute.xlu0 %1357
  %1359 = vrot.lane.b32.xlu0 %v981, 16
  %v1360 = vpop.permute.xlu0 %1359
  %1361 = vrot.lane.b32.xlu0 %v986, 16
  %v1362 = vpop.permute.xlu0 %1361
  %1363 = vrot.lane.b32.xlu0 %v991, 16
  %v1364 = vpop.permute.xlu0 %1363
  %1365 = vrot.lane.b32.xlu0 %v996, 16
  %v1366 = vpop.permute.xlu0 %1365
  %1367 = vrot.lane.b32.xlu0 %v1001, 16
  %v1368 = vpop.permute.xlu0 %1367
  %1369 = vrot.lane.b32.xlu0 %v1006, 16
  %v1370 = vpop.permute.xlu0 %1369
  %1371 = vrot.lane.b32.xlu0 %v1011, 16
  %v1372 = vpop.permute.xlu0 %1371
  %1373 = vrot.lane.b32.xlu0 %v1016, 16
  %v1374 = vpop.permute.xlu0 %1373
  %1375 = vrot.lane.b32.xlu0 %v1021, 16
  %v1376 = vpop.permute.xlu0 %1375
  %1377 = vrot.lane.b32.xlu0 %v1026, 16
  %v1378 = vpop.permute.xlu0 %1377
  %1379 = vrot.lane.b32.xlu0 %v1031, 16
  %v1380 = vpop.permute.xlu0 %1379
  %1381 = vrot.lane.b32.xlu0 %v1036, 16
  %v1382 = vpop.permute.xlu0 %1381
  %1383 = vrot.lane.b32.xlu0 %v1041, 16
  %v1384 = vpop.permute.xlu0 %1383
  %1385 = vrot.lane.b32.xlu0 %v1046, 16
  %v1386 = vpop.permute.xlu0 %1385
  %1419 = vrot.lane.b32.xlu0 %v1116, 32
  %v1420 = vpop.permute.xlu0 %1419
  %1421 = vrot.lane.b32.xlu0 %v1121, 32
  %v1422 = vpop.permute.xlu0 %1421
  %1423 = vrot.lane.b32.xlu0 %v1126, 32
  %v1424 = vpop.permute.xlu0 %1423
  %1425 = vrot.lane.b32.xlu0 %v1131, 32
  %v1426 = vpop.permute.xlu0 %1425
  %1427 = vrot.lane.b32.xlu0 %v1136, 32
  %v1428 = vpop.permute.xlu0 %1427
  %1429 = vrot.lane.b32.xlu0 %v1141, 32
  %v1430 = vpop.permute.xlu0 %1429
  %1431 = vrot.lane.b32.xlu0 %v1146, 32
  %v1432 = vpop.permute.xlu0 %1431
  %1433 = vrot.lane.b32.xlu0 %v1151, 32
  %v1434 = vpop.permute.xlu0 %1433
  %1435 = vrot.lane.b32.xlu0 %v1156, 32
  %v1436 = vpop.permute.xlu0 %1435
  %1437 = vrot.lane.b32.xlu0 %v1161, 32
  %v1438 = vpop.permute.xlu0 %1437
  %1439 = vrot.lane.b32.xlu0 %v1166, 32
  %v1440 = vpop.permute.xlu0 %1439
  %1441 = vrot.lane.b32.xlu0 %v1171, 32
  %v1442 = vpop.permute.xlu0 %1441
  %1443 = vrot.lane.b32.xlu0 %v1176, 32
  %v1444 = vpop.permute.xlu0 %1443
  %1445 = vrot.lane.b32.xlu0 %v1181, 32
  %v1446 = vpop.permute.xlu0 %1445
  %1447 = vrot.lane.b32.xlu0 %v1186, 32
  %v1448 = vpop.permute.xlu0 %1447
  %1449 = vrot.lane.b32.xlu0 %v1191, 32
  %v1450 = vpop.permute.xlu0 %1449
  %1483 = vrot.lane.b32.xlu0 %v1261, 48
  %v1484 = vpop.permute.xlu0 %1483
  %1485 = vrot.lane.b32.xlu0 %v1266, 48
  %v1486 = vpop.permute.xlu0 %1485
  %1487 = vrot.lane.b32.xlu0 %v1271, 48
  %v1488 = vpop.permute.xlu0 %1487
  %1489 = vrot.lane.b32.xlu0 %v1276, 48
  %v1490 = vpop.permute.xlu0 %1489
  %1491 = vrot.lane.b32.xlu0 %v1281, 48
  %v1492 = vpop.permute.xlu0 %1491
  %1493 = vrot.lane.b32.xlu0 %v1286, 48
  %v1494 = vpop.permute.xlu0 %1493
  %1495 = vrot.lane.b32.xlu0 %v1291, 48
  %v1496 = vpop.permute.xlu0 %1495
  %1497 = vrot.lane.b32.xlu0 %v1296, 48
  %v1498 = vpop.permute.xlu0 %1497
  %1499 = vrot.lane.b32.xlu0 %v1301, 48
  %v1500 = vpop.permute.xlu0 %1499
  %1501 = vrot.lane.b32.xlu0 %v1306, 48
  %v1502 = vpop.permute.xlu0 %1501
  %1503 = vrot.lane.b32.xlu0 %v1311, 48
  %v1504 = vpop.permute.xlu0 %1503
  %1505 = vrot.lane.b32.xlu0 %v1316, 48
  %v1506 = vpop.permute.xlu0 %1505
  %1507 = vrot.lane.b32.xlu0 %v1321, 48
  %v1508 = vpop.permute.xlu0 %1507
  %1509 = vrot.lane.b32.xlu0 %v1326, 48
  %v1510 = vpop.permute.xlu0 %1509
  %1511 = vrot.lane.b32.xlu0 %v1331, 48
  %v1512 = vpop.permute.xlu0 %1511
  %1513 = vrot.lane.b32.xlu0 %v1336, 48
  %v1514 = vpop.permute.xlu0 %1513
  %vm1531 = vcmask 130048
  %v1532 = vsel %vm1531, %v888, %v1356
  %v1533 = vsel %vm1531, %v889, %v1358
  %v1534 = vsel %vm1531, %v890, %v1360
  %v1535 = vsel %vm1531, %v891, %v1362
  %v1536 = vsel %vm1531, %v892, %v1364
  %v1537 = vsel %vm1531, %v893, %v1366
  %v1538 = vsel %vm1531, %v894, %v1368
  %v1539 = vsel %vm1531, %v895, %v1370
  %v1540 = vsel %vm1531, %v896, %v1372
  %v1541 = vsel %vm1531, %v897, %v1374
  %v1542 = vsel %vm1531, %v898, %v1376
  %v1543 = vsel %vm1531, %v899, %v1378
  %v1544 = vsel %vm1531, %v900, %v1380
  %v1545 = vsel %vm1531, %v901, %v1382
  %v1546 = vsel %vm1531, %v902, %v1384
  %v1547 = vsel %vm1531, %v903, %v1386
  %v1548 = vsel %vm676, %v1532, %v1420
  %v1549 = vsel %vm676, %v1533, %v1422
  %v1550 = vsel %vm676, %v1534, %v1424
  %v1551 = vsel %vm676, %v1535, %v1426
  %v1552 = vsel %vm676, %v1536, %v1428
  %v1553 = vsel %vm676, %v1537, %v1430
  %v1554 = vsel %vm676, %v1538, %v1432
  %v1555 = vsel %vm676, %v1539, %v1434
  %v1556 = vsel %vm676, %v1540, %v1436
  %v1557 = vsel %vm676, %v1541, %v1438
  %v1558 = vsel %vm676, %v1542, %v1440
  %v1559 = vsel %vm676, %v1543, %v1442
  %v1560 = vsel %vm676, %v1544, %v1444
  %v1561 = vsel %vm676, %v1545, %v1446
  %v1562 = vsel %vm676, %v1546, %v1448
  %v1563 = vsel %vm676, %v1547, %v1450
  %vm1564 = vcmask 392192
  %v1565 = vsel %vm1564, %v1548, %v1484
  %v1566 = vsel %vm1564, %v1549, %v1486
  %v1567 = vsel %vm1564, %v1550, %v1488
  %v1568 = vsel %vm1564, %v1551, %v1490
  %v1569 = vsel %vm1564, %v1552, %v1492
  %v1570 = vsel %vm1564, %v1553, %v1494
  %v1571 = vsel %vm1564, %v1554, %v1496
  %v1572 = vsel %vm1564, %v1555, %v1498
  %v1573 = vsel %vm1564, %v1556, %v1500
  %v1574 = vsel %vm1564, %v1557, %v1502
  %v1575 = vsel %vm1564, %v1558, %v1504
  %v1576 = vsel %vm1564, %v1559, %v1506
  %v1577 = vsel %vm1564, %v1560, %v1508
  %v1578 = vsel %vm1564, %v1561, %v1510
  %v1579 = vsel %vm1564, %v1562, %v1512
  %v1580 = vsel %vm1564, %v1563, %v1514
  %v1581 = vld [vmem:[%s3] sm:$0xff]
  %v1582 = vld [vmem:[%s3 + $0x8] sm:$0xff]
  %v1583 = vld [vmem:[%s3 + $0x10] sm:$0xff]
  %v1584 = vld [vmem:[%s3 + $0x18] sm:$0xff]
  %v1585 = vld [vmem:[%s3 + $0x20] sm:$0xff]
  %v1586 = vld [vmem:[%s3 + $0x28] sm:$0xff]
  %v1587 = vld [vmem:[%s3 + $0x30] sm:$0xff]
  %v1588 = vld [vmem:[%s3 + $0x38] sm:$0xff]
  %v1590 = vsel %vm693, %v1565, 0
  %v1593 = vsel %vm693, %v1566, 0
  %v1596 = vsel %vm693, %v1567, 0
  %v1599 = vsel %vm693, %v1568, 0
  %v1602 = vsel %vm693, %v1569, 0
  %v1605 = vsel %vm693, %v1570, 0
  %v1608 = vsel %vm693, %v1571, 0
  %v1611 = vsel %vm693, %v1572, 0
  %v1614 = vsel %vm693, %v1573, 0
  %v1617 = vsel %vm693, %v1574, 0
  %v1620 = vsel %vm693, %v1575, 0
  %v1623 = vsel %vm693, %v1576, 0
  %v1626 = vsel %vm693, %v1577, 0
  %v1629 = vsel %vm693, %v1578, 0
  %v1632 = vsel %vm693, %v1579, 0
  %v1635 = vsel %vm693, %v1580, 0
  %1637 = vmatprep.subr.mxu0 0.0
  %1638 = vmatpush1.msra.mxu0 %v1581
  %1639 = vmatprep.subr.mxu0 0.0
  %1640 = vmatpush1.msra.mxu0 %v1582
  %1641 = vmatprep.subr.mxu0 0.0
  %1642 = vmatpush1.msra.mxu0 %v1583
  %1643 = vmatprep.subr.mxu0 0.0
  %1644 = vmatpush1.msra.mxu0 %v1584
  %1645 = vmatprep.subr.mxu0 0.0
  %1646 = vmatpush1.msra.mxu0 %v1585
  %1647 = vmatprep.subr.mxu0 0.0
  %1648 = vmatpush1.msra.mxu0 %v1586
  %1649 = vmatprep.subr.mxu0 0.0
  %1650 = vmatpush1.msra.mxu0 %v1587
  %1651 = vmatprep.subr.mxu0 0.0
  %1652 = vmatpush1.msra.mxu0 %v1588
  %1653 = vmatprep.subr.mxu0 0.0
  %1654 = vmatpush1.msra.mxu0 0.0
  %1655 = vmatprep.subr.mxu0 0.0
  %1656 = vmatpush1.msra.mxu0 0.0
  %1657 = vmatprep.subr.mxu0 0.0
  %1658 = vmatpush1.msra.mxu0 0.0
  %1659 = vmatprep.subr.mxu0 0.0
  %1660 = vmatpush1.msra.mxu0 0.0
  %1661 = vmatprep.subr.mxu0 0.0
  %1662 = vmatpush1.msra.mxu0 0.0
  %1663 = vmatprep.subr.mxu0 0.0
  %1664 = vmatpush1.msra.mxu0 0.0
  %1665 = vmatprep.subr.mxu0 0.0
  %1666 = vmatpush1.msra.mxu0 0.0
  %1667 = vmatprep.subr.mxu0 0.0
  %1668 = vmatpush1.msra.mxu0 0.0
  %1669 = vmatprep.subr.mxu0 0.0
  %1670 = vmatpush1.msra.mxu0 0.0
  %1671 = vmatprep.subr.mxu0 0.0
  %1672 = vmatpush1.msra.mxu0 0.0
  %1673 = vmatprep.subr.mxu0 0.0
  %1674 = vmatpush1.msra.mxu0 0.0
  %1675 = vmatprep.subr.mxu0 0.0
  %1676 = vmatpush1.msra.mxu0 0.0
  %1677 = vmatprep.subr.mxu0 0.0
  %1678 = vmatpush1.msra.mxu0 0.0
  %1679 = vmatprep.subr.mxu0 0.0
  %1680 = vmatpush1.msra.mxu0 0.0
  %1681 = vmatprep.subr.mxu0 0.0
  %1682 = vmatpush1.msra.mxu0 0.0
  %1683 = vmatprep.subr.mxu0 0.0
  %1684 = vmatpush1.msra.mxu0 0.0
  %1685 = vmatprep.subr.mxu0 0.0
  %1686 = vmatpush1.msra.mxu0 0.0
  %1687 = vmatprep.subr.mxu0 0.0
  %1688 = vmatpush1.msra.mxu0 0.0
  %1689 = vmatprep.subr.mxu0 0.0
  %1690 = vmatpush1.msra.mxu0 0.0
  %1691 = vmatprep.subr.mxu0 0.0
  %1692 = vmatpush1.msra.mxu0 0.0
  %1693 = vmatprep.subr.mxu0 0.0
  %1694 = vmatpush1.msra.mxu0 0.0
  %1695 = vmatprep.subr.mxu0 0.0
  %1696 = vmatpush1.msra.mxu0 0.0
  %1697 = vmatprep.subr.mxu0 0.0
  %1698 = vmatpush1.msra.mxu0 0.0
  %1699 = vmatprep.subr.mxu0 0.0
  %1700 = vmatpush1.msra.mxu0 0.0
  %1701 = vmatprep.mubr.f32.mxu0 0.0
  %1702 = vmatmul.mubr.f32.gmra.mrb[0].mxu0 %v1590
  %v1703 = vpop.f32.mrb[0].mxu0
  %v1704 = vadd.f32 0.0, %v1703
  %v1705 = vpop.f32.mrb[0].mxu0
  %1706 = vmatprep.mubr.f32.mxu0 0.0
  %1707 = vmatmul.mubr.f32.gmra.mrb[0].mxu0 %v1593
  %v1708 = vpop.f32.mrb[0].mxu0
  %v1709 = vadd.f32 0.0, %v1708
  %v1710 = vpop.f32.mrb[0].mxu0
  %1711 = vmatprep.mubr.f32.mxu0 0.0
  %1712 = vmatmul.mubr.f32.gmra.mrb[0].mxu0 %v1596
  %v1713 = vpop.f32.mrb[0].mxu0
  %v1714 = vadd.f32 0.0, %v1713
  %v1715 = vpop.f32.mrb[0].mxu0
  %1716 = vmatprep.mubr.f32.mxu0 0.0
  %1717 = vmatmul.mubr.f32.gmra.mrb[0].mxu0 %v1599
  %v1718 = vpop.f32.mrb[0].mxu0
  %v1719 = vadd.f32 0.0, %v1718
  %v1720 = vpop.f32.mrb[0].mxu0
  %1721 = vmatprep.mubr.f32.mxu0 0.0
  %1722 = vmatmul.mubr.f32.gmra.mrb[0].mxu0 %v1602
  %v1723 = vpop.f32.mrb[0].mxu0
  %v1724 = vadd.f32 0.0, %v1723
  %v1725 = vpop.f32.mrb[0].mxu0
  %1726 = vmatprep.mubr.f32.mxu0 0.0
  %1727 = vmatmul.mubr.f32.gmra.mrb[0].mxu0 %v1605
  %v1728 = vpop.f32.mrb[0].mxu0
  %v1729 = vadd.f32 0.0, %v1728
  %v1730 = vpop.f32.mrb[0].mxu0
  %1731 = vmatprep.mubr.f32.mxu0 0.0
  %1732 = vmatmul.mubr.f32.gmra.mrb[0].mxu0 %v1608
  %v1733 = vpop.f32.mrb[0].mxu0
  %v1734 = vadd.f32 0.0, %v1733
  %v1735 = vpop.f32.mrb[0].mxu0
  %1736 = vmatprep.mubr.f32.mxu0 0.0
  %1737 = vmatmul.mubr.f32.gmra.mrb[0].mxu0 %v1611
  %v1738 = vpop.f32.mrb[0].mxu0
  %v1739 = vadd.f32 0.0, %v1738
  %v1740 = vpop.f32.mrb[0].mxu0
  %1741 = vmatprep.mubr.f32.mxu0 0.0
  %1742 = vmatmul.mubr.f32.gmra.mrb[0].mxu0 %v1614
  %v1743 = vpop.f32.mrb[0].mxu0
  %v1744 = vadd.f32 0.0, %v1743
  %v1745 = vpop.f32.mrb[0].mxu0
  %1746 = vmatprep.mubr.f32.mxu0 0.0
  %1747 = vmatmul.mubr.f32.gmra.mrb[0].mxu0 %v1617
  %v1748 = vpop.f32.mrb[0].mxu0
  %v1749 = vadd.f32 0.0, %v1748
  %v1750 = vpop.f32.mrb[0].mxu0
  %1751 = vmatprep.mubr.f32.mxu0 0.0
  %1752 = vmatmul.mubr.f32.gmra.mrb[0].mxu0 %v1620
  %v1753 = vpop.f32.mrb[0].mxu0
  %v1754 = vadd.f32 0.0, %v1753
  %v1755 = vpop.f32.mrb[0].mxu0
  %1756 = vmatprep.mubr.f32.mxu0 0.0
  %1757 = vmatmul.mubr.f32.gmra.mrb[0].mxu0 %v1623
  %v1758 = vpop.f32.mrb[0].mxu0
  %v1759 = vadd.f32 0.0, %v1758
  %v1760 = vpop.f32.mrb[0].mxu0
  %1761 = vmatprep.mubr.f32.mxu0 0.0
  %1762 = vmatmul.mubr.f32.gmra.mrb[0].mxu0 %v1626
  %v1763 = vpop.f32.mrb[0].mxu0
  %v1764 = vadd.f32 0.0, %v1763
  %v1765 = vpop.f32.mrb[0].mxu0
  %1766 = vmatprep.mubr.f32.mxu0 0.0
  %1767 = vmatmul.mubr.f32.gmra.mrb[0].mxu0 %v1629
  %v1768 = vpop.f32.mrb[0].mxu0
  %v1769 = vadd.f32 0.0, %v1768
  %v1770 = vpop.f32.mrb[0].mxu0
  %1771 = vmatprep.mubr.f32.mxu0 0.0
  %1772 = vmatmul.mubr.f32.gmra.mrb[0].mxu0 %v1632
  %v1773 = vpop.f32.mrb[0].mxu0
  %v1774 = vadd.f32 0.0, %v1773
  %v1775 = vpop.f32.mrb[0].mxu0
  %1776 = vmatprep.mubr.f32.mxu0 0.0
  %1777 = vmatmul.mubr.f32.gmra.mrb[0].mxu0 %v1635
  %v1778 = vpop.f32.mrb[0].mxu0
  %v1779 = vadd.f32 0.0, %v1778
  %v1780 = vpop.f32.mrb[0].mxu0
  %1781 = vdwg.mxu0
  %vm1782 = vcmask 64512
  %1783 = vst.msk [vmem:[%s4] sm:$0xff] %vm1782, %v1704
  %1784 = vst.msk [vmem:[%s4 + $0x8] sm:$0xff] %vm1782, %v1709
  %1785 = vst.msk [vmem:[%s4 + $0x10] sm:$0xff] %vm1782, %v1714
  %1786 = vst.msk [vmem:[%s4 + $0x18] sm:$0xff] %vm1782, %v1719
  %1787 = vst.msk [vmem:[%s4 + $0x20] sm:$0xff] %vm1782, %v1724
  %1788 = vst.msk [vmem:[%s4 + $0x28] sm:$0xff] %vm1782, %v1729
  %1789 = vst.msk [vmem:[%s4 + $0x30] sm:$0xff] %vm1782, %v1734
  %1790 = vst.msk [vmem:[%s4 + $0x38] sm:$0xff] %vm1782, %v1739
  %1791 = vst.msk [vmem:[%s4 + $0x40] sm:$0xff] %vm1782, %v1744
  %1792 = vst.msk [vmem:[%s4 + $0x48] sm:$0xff] %vm1782, %v1749
  %1793 = vst.msk [vmem:[%s4 + $0x50] sm:$0xff] %vm1782, %v1754
  %1794 = vst.msk [vmem:[%s4 + $0x58] sm:$0xff] %vm1782, %v1759
  %1795 = vst.msk [vmem:[%s4 + $0x60] sm:$0xff] %vm1782, %v1764
  %1796 = vst.msk [vmem:[%s4 + $0x68] sm:$0xff] %vm1782, %v1769
  %1797 = vst.msk [vmem:[%s4 + $0x70] sm:$0xff] %vm1782, %v1774
  %1798 = vst.msk [vmem:[%s4 + $0x78] sm:$0xff] %vm1782, %v1779
  // Predicated region
  $region18: #{tpu_custom_call.1} parent=0 // pred_check
    _
  $region19: #{tpu_custom_call.1} parent=0 // pred_check_branch
    %1800 = sbr.rel (0) target = $region21
  $region20: #{tpu_custom_call.1} parent=0 // pred_region
    _
  $region21: #{tpu_custom_call.1} parent=0 // pred_fallthru
    _
  // Predicated region
  $region22: #{tpu_custom_call.1} parent=0 // pred_check
    _
  $region23: #{tpu_custom_call.1} parent=0 // pred_check_branch
    %1802 = sbr.rel (0) target = $region25
  $region24: #{tpu_custom_call.1} parent=0 // pred_region
    _
  $region25: #{tpu_custom_call.1} parent=0 // pred_fallthru
    _

</llo_original>
